<compile_context>
chip_gen: v7x
topology: tpu7x:2x2x1
jax: 0.10.0
libtpu: 0.0.40
codegen_flags: <defaults>
</compile_context>

<pallas_src>
import math
import functools

import jax
import jax.numpy as jnp
from jax.experimental import pallas as pl
from jax.experimental.pallas import tpu as pltpu


def mha_kernel(q_ref, k_ref, v_ref,
               wq_ref, bq_ref, wk_ref, bk_ref, wv_ref, bv_ref,
               wo_ref, bo_ref, o_ref, *, num_heads):
    """One grid step processes a (Bt, S, D) block of batch rows.

    q/k/v refs: (Bt, S, D) bf16.  Weights: (D, D) bf16 (wq pre-scaled by
    1/sqrt(d_k)).  Biases: (1, D) f32 (bq pre-scaled).  Output: (Bt, S, D) f32.
    """
    f32 = jnp.float32
    bf16 = jnp.bfloat16

    bt, s, d_model = q_ref.shape
    d_k = d_model // num_heads
    m = bt * s

    # Flatten batch/seq so the projection matmuls present a (Bt*S, D) M dim to
    # the MXU instead of S rows per batch element.
    xq = q_ref[...].reshape(m, d_model)
    xk = k_ref[...].reshape(m, d_model)
    xv = v_ref[...].reshape(m, d_model)

    # Full-width Q/K/V projections: bf16 operands, f32 accumulation, f32 bias add.
    # 1/sqrt(d_k) is already folded into wq/bq on the host.
    qp = jnp.dot(xq, wq_ref[...], preferred_element_type=f32) + bq_ref[...]
    kp = jnp.dot(xk, wk_ref[...], preferred_element_type=f32) + bk_ref[...]
    vp = jnp.dot(xv, wv_ref[...], preferred_element_type=f32) + bv_ref[...]

    qp = qp.astype(bf16).reshape(bt, s, d_model)
    kp = kp.astype(bf16).reshape(bt, s, d_model)
    vp = vp.astype(bf16).reshape(bt, s, d_model)

    # TODO(synk): optional `mask` argument of the PyTorch forward is not
    # implemented (this kernel covers the mask=None path only).
    # TODO(synk): for long sequences, tile the key axis (flash-style online
    # softmax) instead of materializing the full (S, S) score matrix per head.
    # NOTE: for large head counts switch this static unroll to a head grid axis
    # (or lax.fori_loop) so vreg live ranges stay bounded.
    ctx_heads = []
    for h in range(num_heads):
        lo = h * d_k
        hi = lo + d_k
        qh = qp[:, :, lo:hi]                      # (Bt, S, d_k) bf16
        kh = kp[:, :, lo:hi]
        vh = vp[:, :, lo:hi]

        # scores = (Q / sqrt(d_k)) @ K^T  (scale already folded into wq/bq)
        scores = jnp.einsum('bqd,bkd->bqk', qh, kh, preferred_element_type=f32)

        # numerically stable softmax along the key axis, kept in f32
        scores = scores - jnp.max(scores, axis=-1, keepdims=True)
        p = jnp.exp(scores)
        inv = pl.reciprocal(jnp.sum(p, axis=-1, keepdims=True), approx=True)

        # per-head context; softmax normalization folded in as a scale
        ctx = jnp.einsum('bqk,bkd->bqd', p.astype(bf16), vh,
                         preferred_element_type=f32) * inv
        ctx_heads.append(ctx.astype(bf16))

    # Heads concatenated as register values; single full-depth output projection.
    ctx = jnp.concatenate(ctx_heads, axis=-1).reshape(m, d_model)
    out = jnp.dot(ctx, wo_ref[...], preferred_element_type=f32) + bo_ref[...]
    o_ref[...] = out.reshape(bt, s, d_model).astype(o_ref.dtype)


def _choose_batch_block(batch, seq):
    """Largest divisor of `batch` that (a) targets >=256 rows (Bt*S) per grid
    step for MXU fill and (b) leaves >=2 grid steps when batch > 1 so both v7x
    TensorCores get work."""
    target = max(1, 256 // max(seq, 1))
    for d in sorted((d for d in range(1, batch + 1) if batch % d == 0),
                    reverse=True):
        if d <= target and (batch // d >= 2 or batch == 1):
            return d
    return 1


def multi_head_attention(q, k, v, params, num_heads):
    """q, k, v: (B, S, D) float32; params = (wq, bq, wk, bk, wv, bv, wo, bo) with
    weights in (d_in, d_out) layout and biases shaped (1, d_out)."""
    B, S, D = q.shape
    assert D % num_heads == 0
    d_k = D // num_heads
    wq, bq, wk, bk, wv, bv, wo, bo = params
    out_dtype = q.dtype

    scale = 1.0 / math.sqrt(d_k)
    bf16 = jnp.bfloat16
    f32 = jnp.float32

    # Host-side preprocessing: fold 1/sqrt(d_k) into the Q projection, pre-cast
    # weights and activations to bf16, keep biases in f32 for the f32 bias add.
    wq_b = (wq.astype(f32) * scale).astype(bf16)
    bq_f = bq.astype(f32) * scale
    wk_b, wv_b, wo_b = (w.astype(bf16) for w in (wk, wv, wo))
    bk_f, bv_f, bo_f = (b.astype(f32) for b in (bk, bv, bo))
    q_b, k_b, v_b = (x.astype(bf16) for x in (q, k, v))

    Bt = _choose_batch_block(B, S)
    grid = (B // Bt,)

    batch_spec = pl.BlockSpec((Bt, S, D), lambda b: (b, 0, 0))
    # TODO(synk): pipeline_mode=pl.Buffered(1) on the constant-index weight/bias
    # specs would reclaim their double-buffer VMEM (most valuable on v7x).
    w_spec = pl.BlockSpec((D, D), lambda b: (0, 0))
    b_spec = pl.BlockSpec((1, D), lambda b: (0, 0))

    # VMEM budget: double-buffered activation/output blocks + weights/biases +
    # in-kernel temporaries; capped at 64 MiB so the same sizing fits v7x.
    est = (2 * (3 * Bt * S * D * 2 + Bt * S * D * 4)       # in (bf16) / out (f32) blocks, x2 buffers
           + 2 * (4 * D * D * 2 + 4 * D * 4)                # weights (bf16) + biases (f32), x2 buffers
           + 4 * Bt * S * D * 4 + 2 * Bt * S * S * 4)       # qp/kp/vp/ctx f32 + scores/probs
    vmem_limit = int(min(64 * 1024 * 1024, max(32 * 1024 * 1024, 2 * est)))

    kernel = functools.partial(mha_kernel, num_heads=num_heads)

    return pl.pallas_call(
        kernel,
        out_shape=jax.ShapeDtypeStruct((B, S, D), out_dtype),
        grid_spec=pltpu.PrefetchScalarGridSpec(
            num_scalar_prefetch=0,
            grid=grid,
            in_specs=[batch_spec, batch_spec, batch_spec,
                      w_spec, b_spec, w_spec, b_spec,
                      w_spec, b_spec, w_spec, b_spec],
            out_specs=batch_spec,
        ),
        compiler_params=pltpu.CompilerParams(
            dimension_semantics=("parallel",),
            vmem_limit_bytes=vmem_limit),
    )(q_b, k_b, v_b, wq_b, bq_f, wk_b, bk_f, wv_b, bv_f, wo_b, bo_f)


def reference_mha(q, k, v, params, num_heads):
    """Pure-JAX f32 reference mirroring the PyTorch module's forward (mask=None)."""
    wq, bq, wk, bk, wv, bv, wo, bo = params
    B, S, D = q.shape
    d_k = D // num_heads

    def proj(x, w, b):
        y = x @ w + b
        return y.reshape(B, S, num_heads, d_k).transpose(0, 2, 1, 3)

    Q, K, V = proj(q, wq, bq), proj(k, wk, bk), proj(v, wv, bv)
    scores = jnp.einsum('bhqd,bhkd->bhqk', Q, K) / math.sqrt(d_k)
    attn = jax.nn.softmax(scores, axis=-1)
    ctx = jnp.einsum('bhqk,bhkd->bhqd', attn, V)
    ctx = ctx.transpose(0, 2, 1, 3).reshape(B, S, D)
    return ctx @ wo + bo


if __name__ == "__main__":
    B, S, D, H = 2, 8, 32, 4  # batch, seq, d_model, num_heads -> d_k = 8

    key = jax.random.PRNGKey(0)
    keys = jax.random.split(key, 11)
    bound = 1.0 / math.sqrt(D)  # nn.Linear default init range

    def uni(k_, shape):
        return jax.random.uniform(k_, shape, jnp.float32, -bound, bound)

    # weights in (d_in, d_out) layout, biases as (1, d_out)
    wq, bq = uni(keys[0], (D, D)), uni(keys[1], (1, D))
    wk, bk = uni(keys[2], (D, D)), uni(keys[3], (1, D))
    wv, bv = uni(keys[4], (D, D)), uni(keys[5], (1, D))
    wo, bo = uni(keys[6], (D, D)), uni(keys[7], (1, D))
    params = (wq, bq, wk, bk, wv, bv, wo, bo)

    q = jax.random.normal(keys[8], (B, S, D), jnp.float32)
    k = jax.random.normal(keys[9], (B, S, D), jnp.float32)
    v = jax.random.normal(keys[10], (B, S, D), jnp.float32)

    out = multi_head_attention(q, k, v, params, H)
    out = jax.block_until_ready(out)

    ref = reference_mha(q, k, v, params, H)
    assert out.shape == (B, S, D)
    # tolerance loosened vs the f32 reference: kernel feeds bf16 into the MXU and
    # uses the approx EUP reciprocal for the softmax denominator.
    assert jnp.allclose(out, ref, atol=3e-2, rtol=3e-2), "Pallas output mismatch vs reference"

    print("KERNEL_OK")
</pallas_src>

<mosaic_0001>
module attributes {stable_mosaic.version = 11 : i64} {
  func.func @mha_kernel(%arg0: i32, %arg1: memref<1x8x32xbf16, #tpu.memory_space<vmem>>, %arg2: memref<1x8x32xbf16, #tpu.memory_space<vmem>>, %arg3: memref<1x8x32xbf16, #tpu.memory_space<vmem>>, %arg4: memref<32x32xbf16, #tpu.memory_space<vmem>>, %arg5: memref<1x32xf32, #tpu.memory_space<vmem>>, %arg6: memref<32x32xbf16, #tpu.memory_space<vmem>>, %arg7: memref<1x32xf32, #tpu.memory_space<vmem>>, %arg8: memref<32x32xbf16, #tpu.memory_space<vmem>>, %arg9: memref<1x32xf32, #tpu.memory_space<vmem>>, %arg10: memref<32x32xbf16, #tpu.memory_space<vmem>>, %arg11: memref<1x32xf32, #tpu.memory_space<vmem>>, %arg12: memref<1x8x32xf32, #tpu.memory_space<vmem>>) attributes {dimension_semantics = [#tpu.dimension_semantics<parallel>], iteration_bounds = array<i64: 2>, scalar_prefetch = 0 : i64, scratch_operands = 0 : i64, tpu.core_type = #tpu.core_type<tc>, window_params = [{transform_indices = @transform_0, window_bounds = array<i64: 1, 8, 32>}, {transform_indices = @transform_1, window_bounds = array<i64: 1, 8, 32>}, {transform_indices = @transform_2, window_bounds = array<i64: 1, 8, 32>}, {pipeline_mode = #tpu.pipeline_mode<synchronous>, transform_indices = @transform_3, window_bounds = array<i64: 32, 32>}, {pipeline_mode = #tpu.pipeline_mode<synchronous>, transform_indices = @transform_4, window_bounds = array<i64: 1, 32>}, {pipeline_mode = #tpu.pipeline_mode<synchronous>, transform_indices = @transform_5, window_bounds = array<i64: 32, 32>}, {pipeline_mode = #tpu.pipeline_mode<synchronous>, transform_indices = @transform_6, window_bounds = array<i64: 1, 32>}, {pipeline_mode = #tpu.pipeline_mode<synchronous>, transform_indices = @transform_7, window_bounds = array<i64: 32, 32>}, {pipeline_mode = #tpu.pipeline_mode<synchronous>, transform_indices = @transform_8, window_bounds = array<i64: 1, 32>}, {pipeline_mode = #tpu.pipeline_mode<synchronous>, transform_indices = @transform_9, window_bounds = array<i64: 32, 32>}, {pipeline_mode = #tpu.pipeline_mode<synchronous>, transform_indices = @transform_10, window_bounds = array<i64: 1, 32>}, {transform_indices = @transform_11, window_bounds = array<i64: 1, 8, 32>}]} {
    %c0 = arith.constant 0 : index
    %c0_0 = arith.constant 0 : index
    %c0_1 = arith.constant 0 : index
    %0 = vector.load %arg1[%c0, %c0_0, %c0_1] : memref<1x8x32xbf16, #tpu.memory_space<vmem>>, vector<1x8x32xbf16>
    %1 = vector.shape_cast %0 : vector<1x8x32xbf16> to vector<8x32xbf16>
    %c0_2 = arith.constant 0 : index
    %c0_3 = arith.constant 0 : index
    %c0_4 = arith.constant 0 : index
    %2 = vector.load %arg2[%c0_2, %c0_3, %c0_4] : memref<1x8x32xbf16, #tpu.memory_space<vmem>>, vector<1x8x32xbf16>
    %3 = vector.shape_cast %2 : vector<1x8x32xbf16> to vector<8x32xbf16>
    %c0_5 = arith.constant 0 : index
    %c0_6 = arith.constant 0 : index
    %c0_7 = arith.constant 0 : index
    %4 = vector.load %arg3[%c0_5, %c0_6, %c0_7] : memref<1x8x32xbf16, #tpu.memory_space<vmem>>, vector<1x8x32xbf16>
    %5 = vector.shape_cast %4 : vector<1x8x32xbf16> to vector<8x32xbf16>
    %c0_8 = arith.constant 0 : index
    %c0_9 = arith.constant 0 : index
    %6 = vector.load %arg4[%c0_8, %c0_9] : memref<32x32xbf16, #tpu.memory_space<vmem>>, vector<32x32xbf16>
    %cst = arith.constant dense<0.000000e+00> : vector<8x32xf32>
    %7 = tpu.matmul %1, %6, %cst {dimension_numbers = #tpu.dot_dimension_numbers<[1], [0], [0], [1], [0, 0, 1, 1], [], []>} : vector<8x32xbf16>, vector<32x32xbf16>, vector<8x32xf32> -> vector<8x32xf32>
    %c0_10 = arith.constant 0 : index
    %c0_11 = arith.constant 0 : index
    %8 = vector.load %arg5[%c0_10, %c0_11] : memref<1x32xf32, #tpu.memory_space<vmem>>, vector<1x32xf32>
    %9 = vector.broadcast %8 : vector<1x32xf32> to vector<8x32xf32>
    %10 = arith.addf %7, %9 : vector<8x32xf32>
    %c0_12 = arith.constant 0 : index
    %c0_13 = arith.constant 0 : index
    %11 = vector.load %arg6[%c0_12, %c0_13] : memref<32x32xbf16, #tpu.memory_space<vmem>>, vector<32x32xbf16>
    %cst_14 = arith.constant dense<0.000000e+00> : vector<8x32xf32>
    %12 = tpu.matmul %3, %11, %cst_14 {dimension_numbers = #tpu.dot_dimension_numbers<[1], [0], [0], [1], [0, 0, 1, 1], [], []>} : vector<8x32xbf16>, vector<32x32xbf16>, vector<8x32xf32> -> vector<8x32xf32>
    %c0_15 = arith.constant 0 : index
    %c0_16 = arith.constant 0 : index
    %13 = vector.load %arg7[%c0_15, %c0_16] : memref<1x32xf32, #tpu.memory_space<vmem>>, vector<1x32xf32>
    %14 = vector.broadcast %13 : vector<1x32xf32> to vector<8x32xf32>
    %15 = arith.addf %12, %14 : vector<8x32xf32>
    %c0_17 = arith.constant 0 : index
    %c0_18 = arith.constant 0 : index
    %16 = vector.load %arg8[%c0_17, %c0_18] : memref<32x32xbf16, #tpu.memory_space<vmem>>, vector<32x32xbf16>
    %cst_19 = arith.constant dense<0.000000e+00> : vector<8x32xf32>
    %17 = tpu.matmul %5, %16, %cst_19 {dimension_numbers = #tpu.dot_dimension_numbers<[1], [0], [0], [1], [0, 0, 1, 1], [], []>} : vector<8x32xbf16>, vector<32x32xbf16>, vector<8x32xf32> -> vector<8x32xf32>
    %c0_20 = arith.constant 0 : index
    %c0_21 = arith.constant 0 : index
    %18 = vector.load %arg9[%c0_20, %c0_21] : memref<1x32xf32, #tpu.memory_space<vmem>>, vector<1x32xf32>
    %19 = vector.broadcast %18 : vector<1x32xf32> to vector<8x32xf32>
    %20 = arith.addf %17, %19 : vector<8x32xf32>
    %21 = arith.truncf %10 : vector<8x32xf32> to vector<8x32xbf16>
    %22 = vector.shape_cast %21 : vector<8x32xbf16> to vector<1x8x32xbf16>
    %23 = arith.truncf %15 : vector<8x32xf32> to vector<8x32xbf16>
    %24 = vector.shape_cast %23 : vector<8x32xbf16> to vector<1x8x32xbf16>
    %25 = arith.truncf %20 : vector<8x32xf32> to vector<8x32xbf16>
    %26 = vector.shape_cast %25 : vector<8x32xbf16> to vector<1x8x32xbf16>
    %27 = vector.extract_strided_slice %22 {offsets = [0, 0, 0], sizes = [1, 8, 8], strides = [1, 1, 1]} : vector<1x8x32xbf16> to vector<1x8x8xbf16>
    %28 = vector.extract_strided_slice %24 {offsets = [0, 0, 0], sizes = [1, 8, 8], strides = [1, 1, 1]} : vector<1x8x32xbf16> to vector<1x8x8xbf16>
    %29 = vector.extract_strided_slice %26 {offsets = [0, 0, 0], sizes = [1, 8, 8], strides = [1, 1, 1]} : vector<1x8x32xbf16> to vector<1x8x8xbf16>
    "tpu.trace_start"() <{level = 10 : i32, message = "bqd,bkd->bqk"}> : () -> ()
    %cst_22 = arith.constant dense<0.000000e+00> : vector<1x8x8xf32>
    %30 = tpu.matmul %27, %28, %cst_22 {dimension_numbers = #tpu.dot_dimension_numbers<[2], [2], [1], [1], [0, 0, 0, 1, 1, 1], [0], [0]>} : vector<1x8x8xbf16>, vector<1x8x8xbf16>, vector<1x8x8xf32> -> vector<1x8x8xf32>
    "tpu.trace_stop"() : () -> ()
    %cst_23 = arith.constant dense<0xFF800000> : vector<1x8xf32>
    %31 = vector.multi_reduction <maximumf>, %30, %cst_23 [2] : vector<1x8x8xf32> to vector<1x8xf32>
    %32 = vector.shape_cast %31 : vector<1x8xf32> to vector<1x8x1xf32>
    %33 = vector.broadcast %32 : vector<1x8x1xf32> to vector<1x8x8xf32>
    %34 = arith.subf %30, %33 : vector<1x8x8xf32>
    %35 = math.exp %34 : vector<1x8x8xf32>
    %cst_24 = arith.constant dense<0.000000e+00> : vector<1x8xf32>
    %36 = vector.multi_reduction <add>, %35, %cst_24 [2] : vector<1x8x8xf32> to vector<1x8xf32>
    %37 = vector.shape_cast %36 : vector<1x8xf32> to vector<1x8x1xf32>
    %38 = tpu.reciprocal %37 {approx = true} : vector<1x8x1xf32> -> vector<1x8x1xf32>
    %39 = arith.truncf %35 : vector<1x8x8xf32> to vector<1x8x8xbf16>
    "tpu.trace_start"() <{level = 10 : i32, message = "bqk,bkd->bqd"}> : () -> ()
    %cst_25 = arith.constant dense<0.000000e+00> : vector<1x8x8xf32>
    %40 = tpu.matmul %39, %29, %cst_25 {dimension_numbers = #tpu.dot_dimension_numbers<[2], [1], [1], [2], [0, 0, 0, 1, 1, 2], [0], [0]>} : vector<1x8x8xbf16>, vector<1x8x8xbf16>, vector<1x8x8xf32> -> vector<1x8x8xf32>
    "tpu.trace_stop"() : () -> ()
    %41 = vector.broadcast %38 : vector<1x8x1xf32> to vector<1x8x8xf32>
    %42 = arith.mulf %40, %41 : vector<1x8x8xf32>
    %43 = arith.truncf %42 : vector<1x8x8xf32> to vector<1x8x8xbf16>
    %44 = vector.extract_strided_slice %22 {offsets = [0, 0, 8], sizes = [1, 8, 8], strides = [1, 1, 1]} : vector<1x8x32xbf16> to vector<1x8x8xbf16>
    %45 = vector.extract_strided_slice %24 {offsets = [0, 0, 8], sizes = [1, 8, 8], strides = [1, 1, 1]} : vector<1x8x32xbf16> to vector<1x8x8xbf16>
    %46 = vector.extract_strided_slice %26 {offsets = [0, 0, 8], sizes = [1, 8, 8], strides = [1, 1, 1]} : vector<1x8x32xbf16> to vector<1x8x8xbf16>
    "tpu.trace_start"() <{level = 10 : i32, message = "bqd,bkd->bqk"}> : () -> ()
    %cst_26 = arith.constant dense<0.000000e+00> : vector<1x8x8xf32>
    %47 = tpu.matmul %44, %45, %cst_26 {dimension_numbers = #tpu.dot_dimension_numbers<[2], [2], [1], [1], [0, 0, 0, 1, 1, 1], [0], [0]>} : vector<1x8x8xbf16>, vector<1x8x8xbf16>, vector<1x8x8xf32> -> vector<1x8x8xf32>
    "tpu.trace_stop"() : () -> ()
    %cst_27 = arith.constant dense<0xFF800000> : vector<1x8xf32>
    %48 = vector.multi_reduction <maximumf>, %47, %cst_27 [2] : vector<1x8x8xf32> to vector<1x8xf32>
    %49 = vector.shape_cast %48 : vector<1x8xf32> to vector<1x8x1xf32>
    %50 = vector.broadcast %49 : vector<1x8x1xf32> to vector<1x8x8xf32>
    %51 = arith.subf %47, %50 : vector<1x8x8xf32>
    %52 = math.exp %51 : vector<1x8x8xf32>
    %cst_28 = arith.constant dense<0.000000e+00> : vector<1x8xf32>
    %53 = vector.multi_reduction <add>, %52, %cst_28 [2] : vector<1x8x8xf32> to vector<1x8xf32>
    %54 = vector.shape_cast %53 : vector<1x8xf32> to vector<1x8x1xf32>
    %55 = tpu.reciprocal %54 {approx = true} : vector<1x8x1xf32> -> vector<1x8x1xf32>
    %56 = arith.truncf %52 : vector<1x8x8xf32> to vector<1x8x8xbf16>
    "tpu.trace_start"() <{level = 10 : i32, message = "bqk,bkd->bqd"}> : () -> ()
    %cst_29 = arith.constant dense<0.000000e+00> : vector<1x8x8xf32>
    %57 = tpu.matmul %56, %46, %cst_29 {dimension_numbers = #tpu.dot_dimension_numbers<[2], [1], [1], [2], [0, 0, 0, 1, 1, 2], [0], [0]>} : vector<1x8x8xbf16>, vector<1x8x8xbf16>, vector<1x8x8xf32> -> vector<1x8x8xf32>
    "tpu.trace_stop"() : () -> ()
    %58 = vector.broadcast %55 : vector<1x8x1xf32> to vector<1x8x8xf32>
    %59 = arith.mulf %57, %58 : vector<1x8x8xf32>
    %60 = arith.truncf %59 : vector<1x8x8xf32> to vector<1x8x8xbf16>
    %61 = vector.extract_strided_slice %22 {offsets = [0, 0, 16], sizes = [1, 8, 8], strides = [1, 1, 1]} : vector<1x8x32xbf16> to vector<1x8x8xbf16>
    %62 = vector.extract_strided_slice %24 {offsets = [0, 0, 16], sizes = [1, 8, 8], strides = [1, 1, 1]} : vector<1x8x32xbf16> to vector<1x8x8xbf16>
    %63 = vector.extract_strided_slice %26 {offsets = [0, 0, 16], sizes = [1, 8, 8], strides = [1, 1, 1]} : vector<1x8x32xbf16> to vector<1x8x8xbf16>
    "tpu.trace_start"() <{level = 10 : i32, message = "bqd,bkd->bqk"}> : () -> ()
    %cst_30 = arith.constant dense<0.000000e+00> : vector<1x8x8xf32>
    %64 = tpu.matmul %61, %62, %cst_30 {dimension_numbers = #tpu.dot_dimension_numbers<[2], [2], [1], [1], [0, 0, 0, 1, 1, 1], [0], [0]>} : vector<1x8x8xbf16>, vector<1x8x8xbf16>, vector<1x8x8xf32> -> vector<1x8x8xf32>
    "tpu.trace_stop"() : () -> ()
    %cst_31 = arith.constant dense<0xFF800000> : vector<1x8xf32>
    %65 = vector.multi_reduction <maximumf>, %64, %cst_31 [2] : vector<1x8x8xf32> to vector<1x8xf32>
    %66 = vector.shape_cast %65 : vector<1x8xf32> to vector<1x8x1xf32>
    %67 = vector.broadcast %66 : vector<1x8x1xf32> to vector<1x8x8xf32>
    %68 = arith.subf %64, %67 : vector<1x8x8xf32>
    %69 = math.exp %68 : vector<1x8x8xf32>
    %cst_32 = arith.constant dense<0.000000e+00> : vector<1x8xf32>
    %70 = vector.multi_reduction <add>, %69, %cst_32 [2] : vector<1x8x8xf32> to vector<1x8xf32>
    %71 = vector.shape_cast %70 : vector<1x8xf32> to vector<1x8x1xf32>
    %72 = tpu.reciprocal %71 {approx = true} : vector<1x8x1xf32> -> vector<1x8x1xf32>
    %73 = arith.truncf %69 : vector<1x8x8xf32> to vector<1x8x8xbf16>
    "tpu.trace_start"() <{level = 10 : i32, message = "bqk,bkd->bqd"}> : () -> ()
    %cst_33 = arith.constant dense<0.000000e+00> : vector<1x8x8xf32>
    %74 = tpu.matmul %73, %63, %cst_33 {dimension_numbers = #tpu.dot_dimension_numbers<[2], [1], [1], [2], [0, 0, 0, 1, 1, 2], [0], [0]>} : vector<1x8x8xbf16>, vector<1x8x8xbf16>, vector<1x8x8xf32> -> vector<1x8x8xf32>
    "tpu.trace_stop"() : () -> ()
    %75 = vector.broadcast %72 : vector<1x8x1xf32> to vector<1x8x8xf32>
    %76 = arith.mulf %74, %75 : vector<1x8x8xf32>
    %77 = arith.truncf %76 : vector<1x8x8xf32> to vector<1x8x8xbf16>
    %78 = vector.extract_strided_slice %22 {offsets = [0, 0, 24], sizes = [1, 8, 8], strides = [1, 1, 1]} : vector<1x8x32xbf16> to vector<1x8x8xbf16>
    %79 = vector.extract_strided_slice %24 {offsets = [0, 0, 24], sizes = [1, 8, 8], strides = [1, 1, 1]} : vector<1x8x32xbf16> to vector<1x8x8xbf16>
    %80 = vector.extract_strided_slice %26 {offsets = [0, 0, 24], sizes = [1, 8, 8], strides = [1, 1, 1]} : vector<1x8x32xbf16> to vector<1x8x8xbf16>
    "tpu.trace_start"() <{level = 10 : i32, message = "bqd,bkd->bqk"}> : () -> ()
    %cst_34 = arith.constant dense<0.000000e+00> : vector<1x8x8xf32>
    %81 = tpu.matmul %78, %79, %cst_34 {dimension_numbers = #tpu.dot_dimension_numbers<[2], [2], [1], [1], [0, 0, 0, 1, 1, 1], [0], [0]>} : vector<1x8x8xbf16>, vector<1x8x8xbf16>, vector<1x8x8xf32> -> vector<1x8x8xf32>
    "tpu.trace_stop"() : () -> ()
    %cst_35 = arith.constant dense<0xFF800000> : vector<1x8xf32>
    %82 = vector.multi_reduction <maximumf>, %81, %cst_35 [2] : vector<1x8x8xf32> to vector<1x8xf32>
    %83 = vector.shape_cast %82 : vector<1x8xf32> to vector<1x8x1xf32>
    %84 = vector.broadcast %83 : vector<1x8x1xf32> to vector<1x8x8xf32>
    %85 = arith.subf %81, %84 : vector<1x8x8xf32>
    %86 = math.exp %85 : vector<1x8x8xf32>
    %cst_36 = arith.constant dense<0.000000e+00> : vector<1x8xf32>
    %87 = vector.multi_reduction <add>, %86, %cst_36 [2] : vector<1x8x8xf32> to vector<1x8xf32>
    %88 = vector.shape_cast %87 : vector<1x8xf32> to vector<1x8x1xf32>
    %89 = tpu.reciprocal %88 {approx = true} : vector<1x8x1xf32> -> vector<1x8x1xf32>
    %90 = arith.truncf %86 : vector<1x8x8xf32> to vector<1x8x8xbf16>
    "tpu.trace_start"() <{level = 10 : i32, message = "bqk,bkd->bqd"}> : () -> ()
    %cst_37 = arith.constant dense<0.000000e+00> : vector<1x8x8xf32>
    %91 = tpu.matmul %90, %80, %cst_37 {dimension_numbers = #tpu.dot_dimension_numbers<[2], [1], [1], [2], [0, 0, 0, 1, 1, 2], [0], [0]>} : vector<1x8x8xbf16>, vector<1x8x8xbf16>, vector<1x8x8xf32> -> vector<1x8x8xf32>
    "tpu.trace_stop"() : () -> ()
    %92 = vector.broadcast %89 : vector<1x8x1xf32> to vector<1x8x8xf32>
    %93 = arith.mulf %91, %92 : vector<1x8x8xf32>
    %94 = arith.truncf %93 : vector<1x8x8xf32> to vector<1x8x8xbf16>
    %95 = tpu.concatenate %43, %60, %77, %94 in 2 : vector<1x8x8xbf16>, vector<1x8x8xbf16>, vector<1x8x8xbf16>, vector<1x8x8xbf16> -> vector<1x8x32xbf16>
    %96 = vector.shape_cast %95 : vector<1x8x32xbf16> to vector<8x32xbf16>
    %c0_38 = arith.constant 0 : index
    %c0_39 = arith.constant 0 : index
    %97 = vector.load %arg10[%c0_38, %c0_39] : memref<32x32xbf16, #tpu.memory_space<vmem>>, vector<32x32xbf16>
    %cst_40 = arith.constant dense<0.000000e+00> : vector<8x32xf32>
    %98 = tpu.matmul %96, %97, %cst_40 {dimension_numbers = #tpu.dot_dimension_numbers<[1], [0], [0], [1], [0, 0, 1, 1], [], []>} : vector<8x32xbf16>, vector<32x32xbf16>, vector<8x32xf32> -> vector<8x32xf32>
    %c0_41 = arith.constant 0 : index
    %c0_42 = arith.constant 0 : index
    %99 = vector.load %arg11[%c0_41, %c0_42] : memref<1x32xf32, #tpu.memory_space<vmem>>, vector<1x32xf32>
    %100 = vector.broadcast %99 : vector<1x32xf32> to vector<8x32xf32>
    %101 = arith.addf %98, %100 : vector<8x32xf32>
    %102 = vector.shape_cast %101 : vector<8x32xf32> to vector<1x8x32xf32>
    %c0_43 = arith.constant 0 : index
    %c0_44 = arith.constant 0 : index
    %c0_45 = arith.constant 0 : index
    %103 = vector.load %arg12[%c0_43, %c0_44, %c0_45] : memref<1x8x32xf32, #tpu.memory_space<vmem>>, vector<1x8x32xf32>
    tpu.vector_store %arg12[%c0_43, %c0_44, %c0_45], %102 {strides = array<i32>} : memref<1x8x32xf32, #tpu.memory_space<vmem>>, vector<1x8x32xf32>,
    return
  }
  func.func @transform_0(%arg0: i32) -> (i32, i32, i32) {
    %c0_i32 = arith.constant 0 : i32
    %c0_i32_0 = arith.constant 0 : i32
    %c0_i32_1 = arith.constant 0 : i32
    return %arg0, %c0_i32, %c0_i32_0 : i32, i32, i32
  }
  func.func @transform_1(%arg0: i32) -> (i32, i32, i32) {
    %c0_i32 = arith.constant 0 : i32
    %c0_i32_0 = arith.constant 0 : i32
    %c0_i32_1 = arith.constant 0 : i32
    return %arg0, %c0_i32, %c0_i32_0 : i32, i32, i32
  }
  func.func @transform_2(%arg0: i32) -> (i32, i32, i32) {
    %c0_i32 = arith.constant 0 : i32
    %c0_i32_0 = arith.constant 0 : i32
    %c0_i32_1 = arith.constant 0 : i32
    return %arg0, %c0_i32, %c0_i32_0 : i32, i32, i32
  }
  func.func @transform_3(%arg0: i32) -> (i32, i32) {
    %c0_i32 = arith.constant 0 : i32
    %c0_i32_0 = arith.constant 0 : i32
    %c0_i32_1 = arith.constant 0 : i32
    return %c0_i32, %c0_i32_0 : i32, i32
  }
  func.func @transform_4(%arg0: i32) -> (i32, i32) {
    %c0_i32 = arith.constant 0 : i32
    %c0_i32_0 = arith.constant 0 : i32
    %c0_i32_1 = arith.constant 0 : i32
    return %c0_i32, %c0_i32_0 : i32, i32
  }
  func.func @transform_5(%arg0: i32) -> (i32, i32) {
    %c0_i32 = arith.constant 0 : i32
    %c0_i32_0 = arith.constant 0 : i32
    %c0_i32_1 = arith.constant 0 : i32
    return %c0_i32, %c0_i32_0 : i32, i32
  }
  func.func @transform_6(%arg0: i32) -> (i32, i32) {
    %c0_i32 = arith.constant 0 : i32
    %c0_i32_0 = arith.constant 0 : i32
    %c0_i32_1 = arith.constant 0 : i32
    return %c0_i32, %c0_i32_0 : i32, i32
  }
  func.func @transform_7(%arg0: i32) -> (i32, i32) {
    %c0_i32 = arith.constant 0 : i32
    %c0_i32_0 = arith.constant 0 : i32
    %c0_i32_1 = arith.constant 0 : i32
    return %c0_i32, %c0_i32_0 : i32, i32
  }
  func.func @transform_8(%arg0: i32) -> (i32, i32) {
    %c0_i32 = arith.constant 0 : i32
    %c0_i32_0 = arith.constant 0 : i32
    %c0_i32_1 = arith.constant 0 : i32
    return %c0_i32, %c0_i32_0 : i32, i32
  }
  func.func @transform_9(%arg0: i32) -> (i32, i32) {
    %c0_i32 = arith.constant 0 : i32
    %c0_i32_0 = arith.constant 0 : i32
    %c0_i32_1 = arith.constant 0 : i32
    return %c0_i32, %c0_i32_0 : i32, i32
  }
  func.func @transform_10(%arg0: i32) -> (i32, i32) {
    %c0_i32 = arith.constant 0 : i32
    %c0_i32_0 = arith.constant 0 : i32
    %c0_i32_1 = arith.constant 0 : i32
    return %c0_i32, %c0_i32_0 : i32, i32
  }
  func.func @transform_11(%arg0: i32) -> (i32, i32, i32) {
    %c0_i32 = arith.constant 0 : i32
    %c0_i32_0 = arith.constant 0 : i32
    %c0_i32_1 = arith.constant 0 : i32
    return %arg0, %c0_i32, %c0_i32_0 : i32, i32, i32
  }
}

</mosaic_0001>

<llo_original>
// kernel: tpu_custom_call.1
$region0: #{tpu_custom_call.1}
  #allocation0 [shape = 'u32[]', space=smem, size = 0x4, offset = 0x4, fixed_abs, tag = 'smem constant byte address 0x4 - core index']
  #allocation1 [shape = 'u32[144,128]{1,0:T(1,128)}', space=vmem, size = 0x12000, scoped, tag = 'internal scratch']
  %s0 = inlined_call_operand.hbm [shape: bf16[2,8,32], index: 0, kind: input, shape index: {}]
  %s1 = inlined_call_operand.hbm [shape: bf16[2,8,32], index: 1, kind: input, shape index: {}]
  %s2 = inlined_call_operand.hbm [shape: bf16[2,8,32], index: 2, kind: input, shape index: {}]
  %s3 = inlined_call_operand.hbm [shape: bf16[32,32], index: 3, kind: input, shape index: {}]
  %s4 = inlined_call_operand.vmem [shape: f32[1,32], index: 4, kind: input, shape index: {}]
  %s5 = inlined_call_operand.vmem [shape: bf16[32,32], index: 5, kind: input, shape index: {}]
  %s6 = inlined_call_operand.vmem [shape: f32[1,32], index: 6, kind: input, shape index: {}]
  %s7 = inlined_call_operand.hbm [shape: bf16[32,32], index: 7, kind: input, shape index: {}]
  %s8 = inlined_call_operand.hbm [shape: f32[1,32], index: 8, kind: input, shape index: {}]
  %s9 = inlined_call_operand.vmem [shape: bf16[32,32], index: 9, kind: input, shape index: {}]
  %s10 = inlined_call_operand.vmem [shape: f32[1,32], index: 10, kind: input, shape index: {}]
  %s11 = inlined_call_operand.hbm [shape: f32[2,8,32], index: 11, kind: output, shape index: {}]
  %s12 = sld [smem:[#allocation0]]
  $region101: #{tpu_custom_call.1} parent=0
    _
  %s14 = ssub.s32 1, %s12
  %s15 = scalar_select 0, %s14, %s12
  $region1: #{tpu_custom_call.1} parent=0
    #allocation2 [shape = 'u8[4096]{0}', space=vmem, size = 0x1000, scoped, tag = 'input window, operand 0']
    #allocation3 [shape = 's32[2]{0}', space=sflag, size = 0x8, scoped, tag = 'scoped memory for tpu_custom_call.1']
    #allocation4 [shape = 's32[2]{0}', space=sflag, size = 0x8, scoped, tag = 'scoped memory for tpu_custom_call.1']
    #allocation5 [shape = 'u8[4096]{0}', space=vmem, size = 0x1000, scoped, tag = 'input window, operand 1']
    #allocation6 [shape = 's32[2]{0}', space=sflag, size = 0x8, scoped, tag = 'scoped memory for tpu_custom_call.1']
    #allocation7 [shape = 'u8[4096]{0}', space=vmem, size = 0x1000, scoped, tag = 'input window, operand 2']
    #allocation8 [shape = 'u8[8192]{0}', space=vmem, size = 0x2000, scoped, tag = 'input window, operand 3, single buffered']
    #allocation9 [shape = 's32[1]{0}', space=sflag, size = 0x4, scoped, tag = 'scoped memory for tpu_custom_call.1']
    #allocation10 [shape = 'u8[8192]{0}', space=vmem, size = 0x2000, scoped, tag = 'input window, operand 7, single buffered']
    #allocation11 [shape = 'u8[512]{0}', space=vmem, size = 0x400, scoped, tag = 'input window, operand 8, single buffered']
    #allocation12 [shape = 's32[1]{0}', space=sflag, size = 0x4, scoped, tag = 'scoped memory for tpu_custom_call.1']
    #allocation13 [shape = 'u8[8192]{0}', space=vmem, size = 0x2000, scoped, tag = 'output window, operand 0']
    %16 = vsyncpa [#allocation3], 0
    %s17 = scalar_lea.sflag [#allocation3], 1
    %18 = vsyncpa %s17, 0
    %19 = vsyncpa [#allocation6], 0
    %s20 = scalar_lea.sflag [#allocation6], 1
    %21 = vsyncpa %s20, 0
    %22 = vsyncpa [#allocation9], 0
    %23 = vsyncpa [#allocation12], 0
    %24 = vsyncpa [#allocation4], 0
    %s25 = scalar_lea.sflag [#allocation4], 1
    %26 = vsyncpa %s25, 0
    loop: start=0, step=1, limit=4
    $region2: #{tpu_custom_call.1} parent=1 // loop_pre_header
      _
    $region3: #{tpu_custom_call.1} parent=1 // loop_header
      %s28 = sphi 0, %s32
      %p29 = scmp.ge.s32.totalorder %s28, 4
      %s38 = sphi 0, %s40
      %s41 = sphi 0, %s38
      %s42 = sphi 0, %s41
      %s58 = sphi 0, %s42
      %s64 = sphi 0, %s66
      %s67 = sphi 0, %s64
      %s68 = sphi 0, %s67
      %s84 = sphi 0, %s68
      %s90 = sphi 0, %s92
      %s93 = sphi 0, %s90
      %s94 = sphi 0, %s93
      %s110 = sphi 0, %s94
      %s114 = sphi 0, %s114
      %s116 = sphi 0, %s114
      %s117 = sphi 0, %s116
      %s131 = sphi 0, %s117
      %s135 = sphi 0, %s135
      %s137 = sphi 0, %s135
      %s138 = sphi 0, %s137
      %s152 = sphi 0, %s138
      %s156 = sphi 0, %s156
      %s158 = sphi 0, %s156
      %s159 = sphi 0, %s158
      %s173 = sphi 0, %s159
      %s177 = sphi 0, %s177
      %s179 = sphi 0, %s177
      %s180 = sphi 0, %s179
      %s194 = sphi 0, %s180
      %s198 = sphi 0, %s198
      %s200 = sphi 0, %s198
      %s201 = sphi 0, %s200
      %s215 = sphi 0, %s201
      %s219 = sphi 0, %s219
      %s221 = sphi 0, %s219
      %s222 = sphi 0, %s221
      %s236 = sphi 0, %s222
      %s240 = sphi 0, %s240
      %s242 = sphi 0, %s240
      %s243 = sphi 0, %s242
      %s257 = sphi 0, %s243
      %s261 = sphi 0, %s261
      %s263 = sphi 0, %s261
      %s264 = sphi 0, %s263
      %s278 = sphi 0, %s264
      %s284 = sphi 0, %s286
      %s287 = sphi 0, %s284
      %s288 = sphi 0, %s287
      %s304 = sphi 0, %s288
    $region4: #{tpu_custom_call.1} parent=1 // loop_header_branch
      %31 = sbr.rel (%p29) target = $region8
    $region5: #{tpu_custom_call.1} parent=1 // loop_body
      %s33 = ssub.s32 %s28, 1
      %s34 = ssub.s32 %s28, 2
      %s35 = sadd.s32 %s28, 1
      %s36 = ssub.s32 %s28, %s35
      %p37 = scmp.eq.s32.totalorder %s36, 0
      %s39 = sadd.s32 %s38, 1
      %s40 = scalar_select %p37, %s38, %s39
      %p43 = pneg %p37
      %p44 = scmp.eq.s32.totalorder %s28, 1
      %p45 = por %p43, %p44
      %p46 = scmp.ne.s32.totalorder %s38, %s41
      %p47 = scmp.eq.s32.totalorder %s28, 0
      %p48 = por %p46, %p47
      %p49 = scmp.ne.s32.totalorder %s38, %s41
      %p50 = scmp.eq.s32.totalorder %s33, 1
      %p51 = por %p49, %p50
      %p52 = scmp.ne.s32.totalorder %s41, %s42
      %p53 = scmp.eq.s32.totalorder %s33, 0
      %p54 = por %p52, %p53
      %p55 = scmp.ne.s32.totalorder %s41, %s42
      %p56 = scmp.eq.s32.totalorder %s34, 1
      %p57 = por %p55, %p56
      %p59 = scmp.ne.s32.totalorder %s42, %s58
      %p60 = scmp.eq.s32.totalorder %s34, 0
      %p61 = por %p59, %p60
      %s62 = ssub.s32 %s28, %s35
      %p63 = scmp.eq.s32.totalorder %s62, 0
      %s65 = sadd.s32 %s64, 1
      %s66 = scalar_select %p63, %s64, %s65
      %p69 = pneg %p63
      %p70 = scmp.eq.s32.totalorder %s28, 1
      %p71 = por %p69, %p70
      %p72 = scmp.ne.s32.totalorder %s64, %s67
      %p73 = scmp.eq.s32.totalorder %s28, 0
      %p74 = por %p72, %p73
      %p75 = scmp.ne.s32.totalorder %s64, %s67
      %p76 = scmp.eq.s32.totalorder %s33, 1
      %p77 = por %p75, %p76
      %p78 = scmp.ne.s32.totalorder %s67, %s68
      %p79 = scmp.eq.s32.totalorder %s33, 0
      %p80 = por %p78, %p79
      %p81 = scmp.ne.s32.totalorder %s67, %s68
      %p82 = scmp.eq.s32.totalorder %s34, 1
      %p83 = por %p81, %p82
      %p85 = scmp.ne.s32.totalorder %s68, %s84
      %p86 = scmp.eq.s32.totalorder %s34, 0
      %p87 = por %p85, %p86
      %s88 = ssub.s32 %s28, %s35
      %p89 = scmp.eq.s32.totalorder %s88, 0
      %s91 = sadd.s32 %s90, 1
      %s92 = scalar_select %p89, %s90, %s91
      %p95 = pneg %p89
      %p96 = scmp.eq.s32.totalorder %s28, 1
      %p97 = por %p95, %p96
      %p98 = scmp.ne.s32.totalorder %s90, %s93
      %p99 = scmp.eq.s32.totalorder %s28, 0
      %p100 = por %p98, %p99
      %p101 = scmp.ne.s32.totalorder %s90, %s93
      %p102 = scmp.eq.s32.totalorder %s33, 1
      %p103 = por %p101, %p102
      %p104 = scmp.ne.s32.totalorder %s93, %s94
      %p105 = scmp.eq.s32.totalorder %s33, 0
      %p106 = por %p104, %p105
      %p107 = scmp.ne.s32.totalorder %s93, %s94
      %p108 = scmp.eq.s32.totalorder %s34, 1
      %p109 = por %p107, %p108
      %p111 = scmp.ne.s32.totalorder %s94, %s110
      %p112 = scmp.eq.s32.totalorder %s34, 0
      %p113 = por %p111, %p112
      %s115 = sadd.s32 %s114, 1
      %p118 = scmp.eq.s32.totalorder %s28, 1
      %p119 = scmp.ne.s32.totalorder %s114, %s116
      %p120 = scmp.eq.s32.totalorder %s28, 0
      %p121 = por %p119, %p120
      %p122 = scmp.ne.s32.totalorder %s114, %s116
      %p123 = scmp.eq.s32.totalorder %s33, 1
      %p124 = por %p122, %p123
      %p125 = scmp.ne.s32.totalorder %s116, %s117
      %p126 = scmp.eq.s32.totalorder %s33, 0
      %p127 = por %p125, %p126
      %p128 = scmp.ne.s32.totalorder %s116, %s117
      %p129 = scmp.eq.s32.totalorder %s34, 1
      %p130 = por %p128, %p129
      %p132 = scmp.ne.s32.totalorder %s117, %s131
      %p133 = scmp.eq.s32.totalorder %s34, 0
      %p134 = por %p132, %p133
      %s136 = sadd.s32 %s135, 1
      %p139 = scmp.eq.s32.totalorder %s28, 1
      %p140 = scmp.ne.s32.totalorder %s135, %s137
      %p141 = scmp.eq.s32.totalorder %s28, 0
      %p142 = por %p140, %p141
      %p143 = scmp.ne.s32.totalorder %s135, %s137
      %p144 = scmp.eq.s32.totalorder %s33, 1
      %p145 = por %p143, %p144
      %p146 = scmp.ne.s32.totalorder %s137, %s138
      %p147 = scmp.eq.s32.totalorder %s33, 0
      %p148 = por %p146, %p147
      %p149 = scmp.ne.s32.totalorder %s137, %s138
      %p150 = scmp.eq.s32.totalorder %s34, 1
      %p151 = por %p149, %p150
      %p153 = scmp.ne.s32.totalorder %s138, %s152
      %p154 = scmp.eq.s32.totalorder %s34, 0
      %p155 = por %p153, %p154
      %s157 = sadd.s32 %s156, 1
      %p160 = scmp.eq.s32.totalorder %s28, 1
      %p161 = scmp.ne.s32.totalorder %s156, %s158
      %p162 = scmp.eq.s32.totalorder %s28, 0
      %p163 = por %p161, %p162
      %p164 = scmp.ne.s32.totalorder %s156, %s158
      %p165 = scmp.eq.s32.totalorder %s33, 1
      %p166 = por %p164, %p165
      %p167 = scmp.ne.s32.totalorder %s158, %s159
      %p168 = scmp.eq.s32.totalorder %s33, 0
      %p169 = por %p167, %p168
      %p170 = scmp.ne.s32.totalorder %s158, %s159
      %p171 = scmp.eq.s32.totalorder %s34, 1
      %p172 = por %p170, %p171
      %p174 = scmp.ne.s32.totalorder %s159, %s173
      %p175 = scmp.eq.s32.totalorder %s34, 0
      %p176 = por %p174, %p175
      %s178 = sadd.s32 %s177, 1
      %p181 = scmp.eq.s32.totalorder %s28, 1
      %p182 = scmp.ne.s32.totalorder %s177, %s179
      %p183 = scmp.eq.s32.totalorder %s28, 0
      %p184 = por %p182, %p183
      %p185 = scmp.ne.s32.totalorder %s177, %s179
      %p186 = scmp.eq.s32.totalorder %s33, 1
      %p187 = por %p185, %p186
      %p188 = scmp.ne.s32.totalorder %s179, %s180
      %p189 = scmp.eq.s32.totalorder %s33, 0
      %p190 = por %p188, %p189
      %p191 = scmp.ne.s32.totalorder %s179, %s180
      %p192 = scmp.eq.s32.totalorder %s34, 1
      %p193 = por %p191, %p192
      %p195 = scmp.ne.s32.totalorder %s180, %s194
      %p196 = scmp.eq.s32.totalorder %s34, 0
      %p197 = por %p195, %p196
      %s199 = sadd.s32 %s198, 1
      %p202 = scmp.eq.s32.totalorder %s28, 1
      %p203 = scmp.ne.s32.totalorder %s198, %s200
      %p204 = scmp.eq.s32.totalorder %s28, 0
      %p205 = por %p203, %p204
      %p206 = scmp.ne.s32.totalorder %s198, %s200
      %p207 = scmp.eq.s32.totalorder %s33, 1
      %p208 = por %p206, %p207
      %p209 = scmp.ne.s32.totalorder %s200, %s201
      %p210 = scmp.eq.s32.totalorder %s33, 0
      %p211 = por %p209, %p210
      %p212 = scmp.ne.s32.totalorder %s200, %s201
      %p213 = scmp.eq.s32.totalorder %s34, 1
      %p214 = por %p212, %p213
      %p216 = scmp.ne.s32.totalorder %s201, %s215
      %p217 = scmp.eq.s32.totalorder %s34, 0
      %p218 = por %p216, %p217
      %s220 = sadd.s32 %s219, 1
      %p223 = scmp.eq.s32.totalorder %s28, 1
      %p224 = scmp.ne.s32.totalorder %s219, %s221
      %p225 = scmp.eq.s32.totalorder %s28, 0
      %p226 = por %p224, %p225
      %p227 = scmp.ne.s32.totalorder %s219, %s221
      %p228 = scmp.eq.s32.totalorder %s33, 1
      %p229 = por %p227, %p228
      %p230 = scmp.ne.s32.totalorder %s221, %s222
      %p231 = scmp.eq.s32.totalorder %s33, 0
      %p232 = por %p230, %p231
      %p233 = scmp.ne.s32.totalorder %s221, %s222
      %p234 = scmp.eq.s32.totalorder %s34, 1
      %p235 = por %p233, %p234
      %p237 = scmp.ne.s32.totalorder %s222, %s236
      %p238 = scmp.eq.s32.totalorder %s34, 0
      %p239 = por %p237, %p238
      %s241 = sadd.s32 %s240, 1
      %p244 = scmp.eq.s32.totalorder %s28, 1
      %p245 = scmp.ne.s32.totalorder %s240, %s242
      %p246 = scmp.eq.s32.totalorder %s28, 0
      %p247 = por %p245, %p246
      %p248 = scmp.ne.s32.totalorder %s240, %s242
      %p249 = scmp.eq.s32.totalorder %s33, 1
      %p250 = por %p248, %p249
      %p251 = scmp.ne.s32.totalorder %s242, %s243
      %p252 = scmp.eq.s32.totalorder %s33, 0
      %p253 = por %p251, %p252
      %p254 = scmp.ne.s32.totalorder %s242, %s243
      %p255 = scmp.eq.s32.totalorder %s34, 1
      %p256 = por %p254, %p255
      %p258 = scmp.ne.s32.totalorder %s243, %s257
      %p259 = scmp.eq.s32.totalorder %s34, 0
      %p260 = por %p258, %p259
      %s262 = sadd.s32 %s261, 1
      %p265 = scmp.eq.s32.totalorder %s28, 1
      %p266 = scmp.ne.s32.totalorder %s261, %s263
      %p267 = scmp.eq.s32.totalorder %s28, 0
      %p268 = por %p266, %p267
      %p269 = scmp.ne.s32.totalorder %s261, %s263
      %p270 = scmp.eq.s32.totalorder %s33, 1
      %p271 = por %p269, %p270
      %p272 = scmp.ne.s32.totalorder %s263, %s264
      %p273 = scmp.eq.s32.totalorder %s33, 0
      %p274 = por %p272, %p273
      %p275 = scmp.ne.s32.totalorder %s263, %s264
      %p276 = scmp.eq.s32.totalorder %s34, 1
      %p277 = por %p275, %p276
      %p279 = scmp.ne.s32.totalorder %s264, %s278
      %p280 = scmp.eq.s32.totalorder %s34, 0
      %p281 = por %p279, %p280
      %s282 = ssub.s32 %s28, %s35
      %p283 = scmp.eq.s32.totalorder %s282, 0
      %s285 = sadd.s32 %s284, 1
      %s286 = scalar_select %p283, %s284, %s285
      %p289 = pneg %p283
      %p290 = scmp.eq.s32.totalorder %s28, 1
      %p291 = por %p289, %p290
      %p292 = scmp.ne.s32.totalorder %s284, %s287
      %p293 = scmp.eq.s32.totalorder %s28, 0
      %p294 = por %p292, %p293
      %p295 = scmp.ne.s32.totalorder %s284, %s287
      %p296 = scmp.eq.s32.totalorder %s33, 1
      %p297 = por %p295, %p296
      %p298 = scmp.ne.s32.totalorder %s287, %s288
      %p299 = scmp.eq.s32.totalorder %s33, 0
      %p300 = por %p298, %p299
      %p301 = scmp.ne.s32.totalorder %s287, %s288
      %p302 = scmp.eq.s32.totalorder %s34, 1
      %p303 = por %p301, %p302
      %p305 = scmp.ne.s32.totalorder %s288, %s304
      %p306 = scmp.eq.s32.totalorder %s34, 0
      %p307 = por %p305, %p306
      %p308 = scmp.le.s32.totalorder 1, %s28
      %p309 = scmp.lt.s32.totalorder %s28, 3
      %p310 = pnand %p308, %p309
      %p311 = pneg %p310
      // Predicated region
      $region9: #{tpu_custom_call.1} parent=5 // pred_check
        _
      $region10: #{tpu_custom_call.1} parent=5 // pred_check_branch
        %313 = sbr.rel (%p310) target = $region12
      $region11: #{tpu_custom_call.1} parent=5 // pred_region
        %s314 = ssub.s32 %s28, 1
        // Predicated region
        $region13: #{tpu_custom_call.1} parent=11 // pred_check
          %p315 = pneg %p127
        $region14: #{tpu_custom_call.1} parent=11 // pred_check_branch
          %317 = sbr.rel (%p315) target = $region16
        $region15: #{tpu_custom_call.1} parent=11 // pred_region
          %s319 = ssub.s32 256, 256
          %320 = vsyncadd [#allocation9], %s319
          %s321 = sshll.u32 [#allocation8], 4
          %s322 = int_to_ptr.vmem [resolvable:$true] %s321
          %327 = dma.hbm_to_vmem [thread:$0]  %s3, 256, %s322, [#allocation9], 64, 64, 4
        $region16: #{tpu_custom_call.1} parent=11 // pred_fallthru
          _
        // Predicated region
        $region17: #{tpu_custom_call.1} parent=11 // pred_check
          %p328 = pneg %p148
        $region18: #{tpu_custom_call.1} parent=11 // pred_check_branch
          %330 = sbr.rel (%p328) target = $region20
        $region19: #{tpu_custom_call.1} parent=11 // pred_region
          _
        $region20: #{tpu_custom_call.1} parent=11 // pred_fallthru
          _
        // Predicated region
        $region21: #{tpu_custom_call.1} parent=11 // pred_check
          %p331 = pneg %p169
        $region22: #{tpu_custom_call.1} parent=11 // pred_check_branch
          %333 = sbr.rel (%p331) target = $region24
        $region23: #{tpu_custom_call.1} parent=11 // pred_region
          _
        $region24: #{tpu_custom_call.1} parent=11 // pred_fallthru
          _
        // Predicated region
        $region25: #{tpu_custom_call.1} parent=11 // pred_check
          %p334 = pneg %p190
        $region26: #{tpu_custom_call.1} parent=11 // pred_check_branch
          %336 = sbr.rel (%p334) target = $region28
        $region27: #{tpu_custom_call.1} parent=11 // pred_region
          _
        $region28: #{tpu_custom_call.1} parent=11 // pred_fallthru
          _
        // Predicated region
        $region29: #{tpu_custom_call.1} parent=11 // pred_check
          %p337 = pneg %p211
        $region30: #{tpu_custom_call.1} parent=11 // pred_check_branch
          %339 = sbr.rel (%p337) target = $region32
        $region31: #{tpu_custom_call.1} parent=11 // pred_region
          %s341 = ssub.s32 256, 256
          %342 = vsyncadd [#allocation9], %s341
          %s343 = sshll.u32 [#allocation10], 4
          %s344 = int_to_ptr.vmem [resolvable:$true] %s343
          %349 = dma.hbm_to_vmem [thread:$0]  %s7, 256, %s344, [#allocation9], 64, 64, 4
        $region32: #{tpu_custom_call.1} parent=11 // pred_fallthru
          _
        // Predicated region
        $region33: #{tpu_custom_call.1} parent=11 // pred_check
          %p350 = pneg %p232
        $region34: #{tpu_custom_call.1} parent=11 // pred_check_branch
          %352 = sbr.rel (%p350) target = $region36
        $region35: #{tpu_custom_call.1} parent=11 // pred_region
          %s354 = ssub.s32 16, 16
          %355 = vsyncadd [#allocation12], %s354
          %s357 = sshll.u32 [#allocation11], 4
          %s358 = int_to_ptr.vmem [resolvable:$true] %s357
          %360 = dma.hbm_to_vmem [thread:$0]  %s8, 16, %s358, [#allocation12]
        $region36: #{tpu_custom_call.1} parent=11 // pred_fallthru
          _
        // Predicated region
        $region37: #{tpu_custom_call.1} parent=11 // pred_check
          %p361 = pneg %p253
        $region38: #{tpu_custom_call.1} parent=11 // pred_check_branch
          %363 = sbr.rel (%p361) target = $region40
        $region39: #{tpu_custom_call.1} parent=11 // pred_region
          _
        $region40: #{tpu_custom_call.1} parent=11 // pred_fallthru
          _
        // Predicated region
        $region41: #{tpu_custom_call.1} parent=11 // pred_check
          %p364 = pneg %p274
        $region42: #{tpu_custom_call.1} parent=11 // pred_check_branch
          %366 = sbr.rel (%p364) target = $region44
        $region43: #{tpu_custom_call.1} parent=11 // pred_region
          _
        $region44: #{tpu_custom_call.1} parent=11 // pred_fallthru
          _
      $region12: #{tpu_custom_call.1} parent=5 // pred_fallthru
        _
      %p367 = scmp.lt.s32.totalorder %s28, 2
      // Predicated region
      $region45: #{tpu_custom_call.1} parent=5 // pred_check
        %p368 = pneg %p367
      $region46: #{tpu_custom_call.1} parent=5 // pred_check_branch
        %370 = sbr.rel (%p368) target = $region48
      $region47: #{tpu_custom_call.1} parent=5 // pred_region
        // Predicated region
        $region49: #{tpu_custom_call.1} parent=47 // pred_check
          %p371 = pneg %p48
        $region50: #{tpu_custom_call.1} parent=47 // pred_check_branch
          %373 = sbr.rel (%p371) target = $region52
        $region51: #{tpu_custom_call.1} parent=47 // pred_region
          %s374 = sand.u32 %s38, 1
          %s375 = scalar_lea.sflag [#allocation3], %s374
          %s376 = sand.u32 %s38, 1
          %s377 = smul.addr %s376, 4
          %s378 = scalar_lea.vmem [#allocation2], %s377
          %s380 = ssub.s32 64, 64
          %381 = vsyncadd %s375, %s380
          %s382 = smul.addr %s28, 64
          %s383 = scalar_lea.hbm %s0, %s382
          %s385 = sshll.u32 %s378, 4
          %s386 = int_to_ptr.vmem [resolvable:$true] %s385
          %388 = dma.hbm_to_vmem [thread:$0]  %s383, 64, %s386, %s375
        $region52: #{tpu_custom_call.1} parent=47 // pred_fallthru
          _
        // Predicated region
        $region53: #{tpu_custom_call.1} parent=47 // pred_check
          %p389 = pneg %p74
        $region54: #{tpu_custom_call.1} parent=47 // pred_check_branch
          %391 = sbr.rel (%p389) target = $region56
        $region55: #{tpu_custom_call.1} parent=47 // pred_region
          %s392 = sand.u32 %s28, 1
          %s393 = scalar_lea.sflag [#allocation6], %s392
          %s394 = sand.u32 %s64, 1
          %s395 = smul.addr %s394, 4
          %s396 = scalar_lea.vmem [#allocation5], %s395
          %s398 = ssub.s32 64, 64
          %399 = vsyncadd %s393, %s398
          %s400 = smul.addr %s28, 64
          %s401 = scalar_lea.hbm %s1, %s400
          %s403 = sshll.u32 %s396, 4
          %s404 = int_to_ptr.vmem [resolvable:$true] %s403
          %406 = dma.hbm_to_vmem [thread:$0]  %s401, 64, %s404, %s393
        $region56: #{tpu_custom_call.1} parent=47 // pred_fallthru
          _
        // Predicated region
        $region57: #{tpu_custom_call.1} parent=47 // pred_check
          %p407 = pneg %p100
        $region58: #{tpu_custom_call.1} parent=47 // pred_check_branch
          %409 = sbr.rel (%p407) target = $region60
        $region59: #{tpu_custom_call.1} parent=47 // pred_region
          %s410 = sand.u32 %s28, 1
          %s411 = scalar_lea.sflag [#allocation6], %s410
          %s412 = sand.u32 %s90, 1
          %s413 = smul.addr %s412, 4
          %s414 = scalar_lea.vmem [#allocation7], %s413
          %s416 = ssub.s32 64, 64
          %417 = vsyncadd %s411, %s416
          %s418 = smul.addr %s28, 64
          %s419 = scalar_lea.hbm %s2, %s418
          %s421 = sshll.u32 %s414, 4
          %s422 = int_to_ptr.vmem [resolvable:$true] %s421
          %424 = dma.hbm_to_vmem [thread:$0]  %s419, 64, %s422, %s411
        $region60: #{tpu_custom_call.1} parent=47 // pred_fallthru
          _
      $region48: #{tpu_custom_call.1} parent=5 // pred_fallthru
        _
      %p425 = scmp.le.s32.totalorder 1, %s28
      %p426 = scmp.lt.s32.totalorder %s28, 3
      %p427 = pnand %p425, %p426
      %p428 = pneg %p427
      // Predicated region
      $region61: #{tpu_custom_call.1} parent=5 // pred_check
        _
      $region62: #{tpu_custom_call.1} parent=5 // pred_check_branch
        %430 = sbr.rel (%p427) target = $region64
      $region63: #{tpu_custom_call.1} parent=5 // pred_region
        %s431 = ssub.s32 %s28, 1
        %s432 = sand.u32 %s41, 1
        %s433 = scalar_lea.sflag [#allocation3], %s432
        %s434 = sand.u32 %s41, 1
        %s435 = smul.addr %s434, 4
        %s436 = scalar_lea.vmem [#allocation2], %s435
        // Predicated region
        $region65: #{tpu_custom_call.1} parent=63 // pred_check
          %p437 = pneg %p54
        $region66: #{tpu_custom_call.1} parent=63 // pred_check_branch
          %439 = sbr.rel (%p437) target = $region68
        $region67: #{tpu_custom_call.1} parent=63 // pred_region
          %440 = dma.done %s433, 64
        $region68: #{tpu_custom_call.1} parent=63 // pred_fallthru
          _
        %s441 = sand.u32 %s33, 1
        %s442 = scalar_lea.sflag [#allocation6], %s441
        %s443 = sand.u32 %s67, 1
        %s444 = smul.addr %s443, 4
        %s445 = scalar_lea.vmem [#allocation5], %s444
        // Predicated region
        $region69: #{tpu_custom_call.1} parent=63 // pred_check
          %p446 = pneg %p80
        $region70: #{tpu_custom_call.1} parent=63 // pred_check_branch
          %448 = sbr.rel (%p446) target = $region72
        $region71: #{tpu_custom_call.1} parent=63 // pred_region
          %449 = dma.done %s442, 64
        $region72: #{tpu_custom_call.1} parent=63 // pred_fallthru
          _
        %s450 = sand.u32 %s33, 1
        %s451 = scalar_lea.sflag [#allocation6], %s450
        %s452 = sand.u32 %s93, 1
        %s453 = smul.addr %s452, 4
        %s454 = scalar_lea.vmem [#allocation7], %s453
        // Predicated region
        $region73: #{tpu_custom_call.1} parent=63 // pred_check
          %p455 = pneg %p106
        $region74: #{tpu_custom_call.1} parent=63 // pred_check_branch
          %457 = sbr.rel (%p455) target = $region76
        $region75: #{tpu_custom_call.1} parent=63 // pred_region
          %458 = dma.done %s451, 64
        $region76: #{tpu_custom_call.1} parent=63 // pred_fallthru
          _
        // Predicated region
        $region77: #{tpu_custom_call.1} parent=63 // pred_check
          %p459 = pneg %p127
        $region78: #{tpu_custom_call.1} parent=63 // pred_check_branch
          %461 = sbr.rel (%p459) target = $region80
        $region79: #{tpu_custom_call.1} parent=63 // pred_region
          %462 = dma.done [#allocation9], 256
        $region80: #{tpu_custom_call.1} parent=63 // pred_fallthru
          _
        // Predicated region
        $region81: #{tpu_custom_call.1} parent=63 // pred_check
          %p463 = pneg %p211
        $region82: #{tpu_custom_call.1} parent=63 // pred_check_branch
          %465 = sbr.rel (%p463) target = $region84
        $region83: #{tpu_custom_call.1} parent=63 // pred_region
          %466 = dma.done [#allocation9], 256
        $region84: #{tpu_custom_call.1} parent=63 // pred_fallthru
          _
        // Predicated region
        $region85: #{tpu_custom_call.1} parent=63 // pred_check
          %p467 = pneg %p232
        $region86: #{tpu_custom_call.1} parent=63 // pred_check_branch
          %469 = sbr.rel (%p467) target = $region88
        $region87: #{tpu_custom_call.1} parent=63 // pred_region
          %470 = dma.done [#allocation12], 16
        $region88: #{tpu_custom_call.1} parent=63 // pred_fallthru
          _
        %s471 = sand.u32 %s41, 1
        %s472 = scalar_lea.sflag [#allocation3], %s471
        %s473 = sand.u32 %s41, 1
        %s474 = smul.addr %s473, 4
        %s475 = scalar_lea.vmem [#allocation2], %s474
        %p476 = pneg %p54
        %p477 = pneg %p51
        %s478 = sand.u32 %s33, 1
        %s479 = scalar_lea.sflag [#allocation6], %s478
        %s480 = sand.u32 %s67, 1
        %s481 = smul.addr %s480, 4
        %s482 = scalar_lea.vmem [#allocation5], %s481
        %p483 = pneg %p80
        %p484 = pneg %p77
        %s485 = sand.u32 %s33, 1
        %s486 = scalar_lea.sflag [#allocation6], %s485
        %s487 = sand.u32 %s93, 1
        %s488 = smul.addr %s487, 4
        %s489 = scalar_lea.vmem [#allocation7], %s488
        %p490 = pneg %p106
        %p491 = pneg %p103
        %p492 = pneg %p127
        %p493 = pneg %p124
        %p494 = pneg %p148
        %p495 = pneg %p145
        %p496 = pneg %p169
        %p497 = pneg %p166
        %p498 = pneg %p190
        %p499 = pneg %p187
        %p500 = pneg %p211
        %p501 = pneg %p208
        %p502 = pneg %p232
        %p503 = pneg %p229
        %p504 = pneg %p253
        %p505 = pneg %p250
        %p506 = pneg %p274
        %p507 = pneg %p271
        %p508 = pneg %p300
        %p509 = pneg %p297
        %s510 = sand.u32 %s287, 1
        %s511 = scalar_lea.sflag [#allocation4], %s510
        %s512 = sand.u32 %s287, 1
        %s513 = smul.addr %s512, 8
        %s514 = scalar_lea.vmem [#allocation13], %s513
        %v516 = vld [vmem:[%s436] sm:$0xf]
        %v517 = vld [vmem:[%s445] sm:$0xf]
        %v518 = vld [vmem:[%s454] sm:$0xf]
        %v519 = vld [vmem:[#allocation8] sm:$0xf]
        %v520 = vld [vmem:[#allocation8 + $0x4] sm:$0xf]
        %v521 = vld [vmem:[#allocation8 + $0x8] sm:$0xf]
        %v522 = vld [vmem:[#allocation8 + $0xc] sm:$0xf]
        %v523 = vld [vmem:[%s4] sm:$0x1]
        %v525 = vlaneseq
        %v526 = vshrl.u32 %v525, 7
        %v527 = vsub.s32 0, %v526
        %v528 = vrot.slane %v523, %v527
        %v534 = vunpack.c.l.b16 %v519
        %v535 = vunpack.c.l.b16 %v520
        %v536 = vunpack.c.l.b16 %v521
        %v537 = vunpack.c.l.b16 %v522
        %v538 = vpack.c.b16 %v535, %v534
        %v539 = vpack.c.b16 %v537, %v536
        %vm542 = vcmask 261120
        %v544 = vsel %vm542, %v516, 0
        %546 = vmatprep.subr.bf16.mxu0 0
        %547 = vmatpush1.bf16.msra.mxu0 %v538
        %548 = vmatprep.subr.bf16.mxu0 0
        %549 = vmatpush1.bf16.msra.mxu0 %v539
        %550 = vmatprep.subr.bf16.mxu0 0
        %551 = vmatpush1.bf16.msra.mxu0 0
        %552 = vmatprep.subr.bf16.mxu0 0
        %553 = vmatpush1.bf16.msra.mxu0 0
        %554 = vmatprep.subr.bf16.mxu0 0
        %555 = vmatpush1.bf16.msra.mxu0 0
        %556 = vmatprep.subr.bf16.mxu0 0
        %557 = vmatpush1.bf16.msra.mxu0 0
        %558 = vmatprep.subr.bf16.mxu0 0
        %559 = vmatpush1.bf16.msra.mxu0 0
        %560 = vmatprep.subr.bf16.mxu0 0
        %561 = vmatpush1.bf16.msra.mxu0 0
        %562 = vmatprep.subr.bf16.mxu0 0
        %563 = vmatpush1.bf16.msra.mxu0 0
        %564 = vmatprep.subr.bf16.mxu0 0
        %565 = vmatpush1.bf16.msra.mxu0 0
        %566 = vmatprep.subr.bf16.mxu0 0
        %567 = vmatpush1.bf16.msra.mxu0 0
        %568 = vmatprep.subr.bf16.mxu0 0
        %569 = vmatpush1.bf16.msra.mxu0 0
        %570 = vmatprep.subr.bf16.mxu0 0
        %571 = vmatpush1.bf16.msra.mxu0 0
        %572 = vmatprep.subr.bf16.mxu0 0
        %573 = vmatpush1.bf16.msra.mxu0 0
        %574 = vmatprep.subr.bf16.mxu0 0
        %575 = vmatpush1.bf16.msra.mxu0 0
        %576 = vmatprep.subr.bf16.mxu0 0
        %577 = vmatpush1.bf16.msra.mxu0 0
        %578 = vmatprep.mubr.bf16.mxu0 0
        %579 = vmatmul.mubr.bf16.gmra.mrb[0].mxu0 %v544
        %v580 = vpop.f32.mrb[0].mxu0
        %v581 = vadd.f32 %v528, %v580
        %v582 = vpop.f32.mrb[0].mxu0
        %v583 = vpop.f32.mrb[0].mxu0
        %v584 = vpop.f32.mrb[0].mxu0
        %585 = vdwg.mxu0
        %v586 = vld [vmem:[%s5] sm:$0xf]
        %v587 = vld [vmem:[%s5 + $0x4] sm:$0xf]
        %v588 = vld [vmem:[%s5 + $0x8] sm:$0xf]
        %v589 = vld [vmem:[%s5 + $0xc] sm:$0xf]
        %v590 = vld [vmem:[%s6] sm:$0x1]
        %v592 = vlaneseq
        %v593 = vshrl.u32 %v592, 7
        %v594 = vsub.s32 0, %v593
        %v595 = vrot.slane %v590, %v594
        %v601 = vunpack.c.l.b16 %v586
        %v602 = vunpack.c.l.b16 %v587
        %v603 = vunpack.c.l.b16 %v588
        %v604 = vunpack.c.l.b16 %v589
        %v605 = vpack.c.b16 %v602, %v601
        %v606 = vpack.c.b16 %v604, %v603
        %v610 = vsel %vm542, %v517, 0
        %612 = vmatprep.subr.bf16.mxu0 0
        %613 = vmatpush1.bf16.msra.mxu0 %v605
        %614 = vmatprep.subr.bf16.mxu0 0
        %615 = vmatpush1.bf16.msra.mxu0 %v606
        %616 = vmatprep.subr.bf16.mxu0 0
        %617 = vmatpush1.bf16.msra.mxu0 0
        %618 = vmatprep.subr.bf16.mxu0 0
        %619 = vmatpush1.bf16.msra.mxu0 0
        %620 = vmatprep.subr.bf16.mxu0 0
        %621 = vmatpush1.bf16.msra.mxu0 0
        %622 = vmatprep.subr.bf16.mxu0 0
        %623 = vmatpush1.bf16.msra.mxu0 0
        %624 = vmatprep.subr.bf16.mxu0 0
        %625 = vmatpush1.bf16.msra.mxu0 0
        %626 = vmatprep.subr.bf16.mxu0 0
        %627 = vmatpush1.bf16.msra.mxu0 0
        %628 = vmatprep.subr.bf16.mxu0 0
        %629 = vmatpush1.bf16.msra.mxu0 0
        %630 = vmatprep.subr.bf16.mxu0 0
        %631 = vmatpush1.bf16.msra.mxu0 0
        %632 = vmatprep.subr.bf16.mxu0 0
        %633 = vmatpush1.bf16.msra.mxu0 0
        %634 = vmatprep.subr.bf16.mxu0 0
        %635 = vmatpush1.bf16.msra.mxu0 0
        %636 = vmatprep.subr.bf16.mxu0 0
        %637 = vmatpush1.bf16.msra.mxu0 0
        %638 = vmatprep.subr.bf16.mxu0 0
        %639 = vmatpush1.bf16.msra.mxu0 0
        %640 = vmatprep.subr.bf16.mxu0 0
        %641 = vmatpush1.bf16.msra.mxu0 0
        %642 = vmatprep.subr.bf16.mxu0 0
        %643 = vmatpush1.bf16.msra.mxu0 0
        %644 = vmatprep.mubr.bf16.mxu0 0
        %645 = vmatmul.mubr.bf16.gmra.mrb[0].mxu0 %v610
        %v646 = vpop.f32.mrb[0].mxu0
        %v647 = vadd.f32 %v595, %v646
        %v648 = vpop.f32.mrb[0].mxu0
        %v649 = vpop.f32.mrb[0].mxu0
        %v650 = vpop.f32.mrb[0].mxu0
        %651 = vdwg.mxu0
        %v652 = vld [vmem:[#allocation10] sm:$0xf]
        %v653 = vld [vmem:[#allocation10 + $0x4] sm:$0xf]
        %v654 = vld [vmem:[#allocation10 + $0x8] sm:$0xf]
        %v655 = vld [vmem:[#allocation10 + $0xc] sm:$0xf]
        %v656 = vld [vmem:[#allocation11] sm:$0x1]
        %v658 = vlaneseq
        %v659 = vshrl.u32 %v658, 7
        %v660 = vsub.s32 0, %v659
        %v661 = vrot.slane %v656, %v660
        %v667 = vunpack.c.l.b16 %v652
        %v668 = vunpack.c.l.b16 %v653
        %v669 = vunpack.c.l.b16 %v654
        %v670 = vunpack.c.l.b16 %v655
        %v671 = vpack.c.b16 %v668, %v667
        %v672 = vpack.c.b16 %v670, %v669
        %v676 = vsel %vm542, %v518, 0
        %678 = vmatprep.subr.bf16.mxu0 0
        %679 = vmatpush1.bf16.msra.mxu0 %v671
        %680 = vmatprep.subr.bf16.mxu0 0
        %681 = vmatpush1.bf16.msra.mxu0 %v672
        %682 = vmatprep.subr.bf16.mxu0 0
        %683 = vmatpush1.bf16.msra.mxu0 0
        %684 = vmatprep.subr.bf16.mxu0 0
        %685 = vmatpush1.bf16.msra.mxu0 0
        %686 = vmatprep.subr.bf16.mxu0 0
        %687 = vmatpush1.bf16.msra.mxu0 0
        %688 = vmatprep.subr.bf16.mxu0 0
        %689 = vmatpush1.bf16.msra.mxu0 0
        %690 = vmatprep.subr.bf16.mxu0 0
        %691 = vmatpush1.bf16.msra.mxu0 0
        %692 = vmatprep.subr.bf16.mxu0 0
        %693 = vmatpush1.bf16.msra.mxu0 0
        %694 = vmatprep.subr.bf16.mxu0 0
        %695 = vmatpush1.bf16.msra.mxu0 0
        %696 = vmatprep.subr.bf16.mxu0 0
        %697 = vmatpush1.bf16.msra.mxu0 0
        %698 = vmatprep.subr.bf16.mxu0 0
        %699 = vmatpush1.bf16.msra.mxu0 0
        %700 = vmatprep.subr.bf16.mxu0 0
        %701 = vmatpush1.bf16.msra.mxu0 0
        %702 = vmatprep.subr.bf16.mxu0 0
        %703 = vmatpush1.bf16.msra.mxu0 0
        %704 = vmatprep.subr.bf16.mxu0 0
        %705 = vmatpush1.bf16.msra.mxu0 0
        %706 = vmatprep.subr.bf16.mxu0 0
        %707 = vmatpush1.bf16.msra.mxu0 0
        %708 = vmatprep.subr.bf16.mxu0 0
        %709 = vmatpush1.bf16.msra.mxu0 0
        %710 = vmatprep.mubr.bf16.mxu0 0
        %711 = vmatmul.mubr.bf16.gmra.mrb[0].mxu0 %v676
        %v712 = vpop.f32.mrb[0].mxu0
        %v713 = vadd.f32 %v661, %v712
        %v714 = vpop.f32.mrb[0].mxu0
        %v715 = vpop.f32.mrb[0].mxu0
        %v716 = vpop.f32.mrb[0].mxu0
        %717 = vdwg.mxu0
        %v718 = vpack.c.bf16 %v581, %v581
        %v719 = vpack.c.bf16 %v647, %v647
        %v720 = vpack.c.bf16 %v713, %v713
        %vm721 = vcmask 64512
        %v723 = vsel %vm721, %v718, 0
        %v726 = vsel %vm721, %v719, 0
        %728 = vmatprep.subr.bf16.mxu0 0
        %729 = vmatpush1.bf16.xpose.msra.mxu0 %v726
        %730 = vmatprep.subr.bf16.mxu0 0
        %731 = vmatpush1.bf16.xpose.msra.mxu0 0
        %732 = vmatprep.subr.bf16.mxu0 0
        %733 = vmatpush1.bf16.xpose.msra.mxu0 0
        %734 = vmatprep.subr.bf16.mxu0 0
        %735 = vmatpush1.bf16.xpose.msra.mxu0 0
        %736 = vmatprep.subr.bf16.mxu0 0
        %737 = vmatpush1.bf16.xpose.msra.mxu0 0
        %738 = vmatprep.subr.bf16.mxu0 0
        %739 = vmatpush1.bf16.xpose.msra.mxu0 0
        %740 = vmatprep.subr.bf16.mxu0 0
        %741 = vmatpush1.bf16.xpose.msra.mxu0 0
        %742 = vmatprep.subr.bf16.mxu0 0
        %743 = vmatpush1.bf16.xpose.msra.mxu0 0
        %744 = vmatprep.subr.bf16.mxu0 0
        %745 = vmatpush1.bf16.xpose.msra.mxu0 0
        %746 = vmatprep.subr.bf16.mxu0 0
        %747 = vmatpush1.bf16.xpose.msra.mxu0 0
        %748 = vmatprep.subr.bf16.mxu0 0
        %749 = vmatpush1.bf16.xpose.msra.mxu0 0
        %750 = vmatprep.subr.bf16.mxu0 0
        %751 = vmatpush1.bf16.xpose.msra.mxu0 0
        %752 = vmatprep.subr.bf16.mxu0 0
        %753 = vmatpush1.bf16.xpose.msra.mxu0 0
        %754 = vmatprep.subr.bf16.mxu0 0
        %755 = vmatpush1.bf16.xpose.msra.mxu0 0
        %756 = vmatprep.subr.bf16.mxu0 0
        %757 = vmatpush1.bf16.xpose.msra.mxu0 0
        %758 = vmatprep.subr.bf16.mxu0 0
        %759 = vmatpush1.bf16.xpose.msra.mxu0 0
        %760 = vmatprep.mubr.bf16.mxu0 0
        %761 = vmatmul.mubr.bf16.gmra.mrb[0].mxu0 %v723
        %v762 = vpop.f32.mrb[0].mxu0
        %v763 = vadd.f32 0.0, %v762
        %v764 = vpop.f32.mrb[0].mxu0
        %v765 = vpop.f32.mrb[0].mxu0
        %v766 = vpop.f32.mrb[0].mxu0
        %767 = vdwg.mxu0
        %v768 = vsel %vm721, %v763, -inf
        %769 = vmax.xlane.f32.xlu0 %v768
        %v770 = vpop.xlane.xlu0 %769
        %v771 = vsub.f32 %v763, %v770
        %v772 = vmul.f32 %v771, 1.442695
        %v773 = vpow.pop %v772
        %v774 = vsel %vm721, %v773, 0.0
        %775 = vadd.xlane.f32.xlu0 %v774
        %v776 = vpop.xlane.xlu0 %775
        %v777 = vrcp.pop %v776
        %v778 = vpack.c.bf16 %v773, %v773
        %v780 = vsel %vm721, %v778, 0
        %vm782 = vcmask 1043456
        %v784 = vsel %vm782, %v720, 0
        %786 = vmatprep.subr.bf16.mxu0 0
        %787 = vmatpush1.bf16.msra.mxu0 %v784
        %788 = vmatprep.subr.bf16.mxu0 0
        %789 = vmatpush1.bf16.msra.mxu0 0
        %790 = vmatprep.subr.bf16.mxu0 0
        %791 = vmatpush1.bf16.msra.mxu0 0
        %792 = vmatprep.subr.bf16.mxu0 0
        %793 = vmatpush1.bf16.msra.mxu0 0
        %794 = vmatprep.subr.bf16.mxu0 0
        %795 = vmatpush1.bf16.msra.mxu0 0
        %796 = vmatprep.subr.bf16.mxu0 0
        %797 = vmatpush1.bf16.msra.mxu0 0
        %798 = vmatprep.subr.bf16.mxu0 0
        %799 = vmatpush1.bf16.msra.mxu0 0
        %800 = vmatprep.subr.bf16.mxu0 0
        %801 = vmatpush1.bf16.msra.mxu0 0
        %802 = vmatprep.subr.bf16.mxu0 0
        %803 = vmatpush1.bf16.msra.mxu0 0
        %804 = vmatprep.subr.bf16.mxu0 0
        %805 = vmatpush1.bf16.msra.mxu0 0
        %806 = vmatprep.subr.bf16.mxu0 0
        %807 = vmatpush1.bf16.msra.mxu0 0
        %808 = vmatprep.subr.bf16.mxu0 0
        %809 = vmatpush1.bf16.msra.mxu0 0
        %810 = vmatprep.subr.bf16.mxu0 0
        %811 = vmatpush1.bf16.msra.mxu0 0
        %812 = vmatprep.subr.bf16.mxu0 0
        %813 = vmatpush1.bf16.msra.mxu0 0
        %814 = vmatprep.subr.bf16.mxu0 0
        %815 = vmatpush1.bf16.msra.mxu0 0
        %816 = vmatprep.subr.bf16.mxu0 0
        %817 = vmatpush1.bf16.msra.mxu0 0
        %818 = vmatprep.mubr.bf16.mxu0 0
        %819 = vmatmul.mubr.bf16.gmra.mrb[0].mxu0 %v780
        %v820 = vpop.f32.mrb[0].mxu0
        %v821 = vadd.f32 0.0, %v820
        %v822 = vpop.f32.mrb[0].mxu0
        %v823 = vpop.f32.mrb[0].mxu0
        %v824 = vpop.f32.mrb[0].mxu0
        %825 = vdwg.mxu0
        %v826 = vmul.f32 %v821, %v777
        %v827 = vpack.c.bf16 %v826, %v826
        %829 = vrot.lane.b32.xlu0 %v718, 120
        %v830 = vpop.permute.xlu0 %829
        %832 = vrot.lane.b32.xlu0 %v719, 120
        %v833 = vpop.permute.xlu0 %832
        %v835 = vsel %vm721, %v830, 0
        %v838 = vsel %vm721, %v833, 0
        %840 = vmatprep.subr.bf16.mxu0 0
        %841 = vmatpush1.bf16.xpose.msra.mxu0 %v838
        %842 = vmatprep.subr.bf16.mxu0 0
        %843 = vmatpush1.bf16.xpose.msra.mxu0 0
        %844 = vmatprep.subr.bf16.mxu0 0
        %845 = vmatpush1.bf16.xpose.msra.mxu0 0
        %846 = vmatprep.subr.bf16.mxu0 0
        %847 = vmatpush1.bf16.xpose.msra.mxu0 0
        %848 = vmatprep.subr.bf16.mxu0 0
        %849 = vmatpush1.bf16.xpose.msra.mxu0 0
        %850 = vmatprep.subr.bf16.mxu0 0
        %851 = vmatpush1.bf16.xpose.msra.mxu0 0
        %852 = vmatprep.subr.bf16.mxu0 0
        %853 = vmatpush1.bf16.xpose.msra.mxu0 0
        %854 = vmatprep.subr.bf16.mxu0 0
        %855 = vmatpush1.bf16.xpose.msra.mxu0 0
        %856 = vmatprep.subr.bf16.mxu0 0
        %857 = vmatpush1.bf16.xpose.msra.mxu0 0
        %858 = vmatprep.subr.bf16.mxu0 0
        %859 = vmatpush1.bf16.xpose.msra.mxu0 0
        %860 = vmatprep.subr.bf16.mxu0 0
        %861 = vmatpush1.bf16.xpose.msra.mxu0 0
        %862 = vmatprep.subr.bf16.mxu0 0
        %863 = vmatpush1.bf16.xpose.msra.mxu0 0
        %864 = vmatprep.subr.bf16.mxu0 0
        %865 = vmatpush1.bf16.xpose.msra.mxu0 0
        %866 = vmatprep.subr.bf16.mxu0 0
        %867 = vmatpush1.bf16.xpose.msra.mxu0 0
        %868 = vmatprep.subr.bf16.mxu0 0
        %869 = vmatpush1.bf16.xpose.msra.mxu0 0
        %870 = vmatprep.subr.bf16.mxu0 0
        %871 = vmatpush1.bf16.xpose.msra.mxu0 0
        %872 = vmatprep.mubr.bf16.mxu0 0
        %873 = vmatmul.mubr.bf16.gmra.mrb[0].mxu0 %v835
        %v874 = vpop.f32.mrb[0].mxu0
        %v875 = vadd.f32 0.0, %v874
        %v876 = vpop.f32.mrb[0].mxu0
        %v877 = vpop.f32.mrb[0].mxu0
        %v878 = vpop.f32.mrb[0].mxu0
        %879 = vdwg.mxu0
        %v880 = vsel %vm721, %v875, -inf
        %881 = vmax.xlane.f32.xlu0 %v880
        %v882 = vpop.xlane.xlu0 %881
        %v883 = vsub.f32 %v875, %v882
        %v884 = vmul.f32 %v883, 1.442695
        %v885 = vpow.pop %v884
        %v886 = vsel %vm721, %v885, 0.0
        %887 = vadd.xlane.f32.xlu0 %v886
        %v888 = vpop.xlane.xlu0 %887
        %v889 = vrcp.pop %v888
        %v890 = vpack.c.bf16 %v885, %v885
        %892 = vrot.lane.b32.xlu0 %v720, 120
        %v893 = vpop.permute.xlu0 %892
        %v895 = vsel %vm721, %v890, 0
        %v898 = vsel %vm782, %v893, 0
        %900 = vmatprep.subr.bf16.mxu0 0
        %901 = vmatpush1.bf16.msra.mxu0 %v898
        %902 = vmatprep.subr.bf16.mxu0 0
        %903 = vmatpush1.bf16.msra.mxu0 0
        %904 = vmatprep.subr.bf16.mxu0 0
        %905 = vmatpush1.bf16.msra.mxu0 0
        %906 = vmatprep.subr.bf16.mxu0 0
        %907 = vmatpush1.bf16.msra.mxu0 0
        %908 = vmatprep.subr.bf16.mxu0 0
        %909 = vmatpush1.bf16.msra.mxu0 0
        %910 = vmatprep.subr.bf16.mxu0 0
        %911 = vmatpush1.bf16.msra.mxu0 0
        %912 = vmatprep.subr.bf16.mxu0 0
        %913 = vmatpush1.bf16.msra.mxu0 0
        %914 = vmatprep.subr.bf16.mxu0 0
        %915 = vmatpush1.bf16.msra.mxu0 0
        %916 = vmatprep.subr.bf16.mxu0 0
        %917 = vmatpush1.bf16.msra.mxu0 0
        %918 = vmatprep.subr.bf16.mxu0 0
        %919 = vmatpush1.bf16.msra.mxu0 0
        %920 = vmatprep.subr.bf16.mxu0 0
        %921 = vmatpush1.bf16.msra.mxu0 0
        %922 = vmatprep.subr.bf16.mxu0 0
        %923 = vmatpush1.bf16.msra.mxu0 0
        %924 = vmatprep.subr.bf16.mxu0 0
        %925 = vmatpush1.bf16.msra.mxu0 0
        %926 = vmatprep.subr.bf16.mxu0 0
        %927 = vmatpush1.bf16.msra.mxu0 0
        %928 = vmatprep.subr.bf16.mxu0 0
        %929 = vmatpush1.bf16.msra.mxu0 0
        %930 = vmatprep.subr.bf16.mxu0 0
        %931 = vmatpush1.bf16.msra.mxu0 0
        %932 = vmatprep.mubr.bf16.mxu0 0
        %933 = vmatmul.mubr.bf16.gmra.mrb[0].mxu0 %v895
        %v934 = vpop.f32.mrb[0].mxu0
        %v935 = vadd.f32 0.0, %v934
        %v936 = vpop.f32.mrb[0].mxu0
        %v937 = vpop.f32.mrb[0].mxu0
        %v938 = vpop.f32.mrb[0].mxu0
        %939 = vdwg.mxu0
        %v940 = vmul.f32 %v935, %v889
        %v941 = vpack.c.bf16 %v940, %v940
        %942 = vrot.lane.b32.xlu0 %v718, 112
        %v943 = vpop.permute.xlu0 %942
        %944 = vrot.lane.b32.xlu0 %v719, 112
        %v945 = vpop.permute.xlu0 %944
        %v947 = vsel %vm721, %v943, 0
        %v950 = vsel %vm721, %v945, 0
        %952 = vmatprep.subr.bf16.mxu0 0
        %953 = vmatpush1.bf16.xpose.msra.mxu0 %v950
        %954 = vmatprep.subr.bf16.mxu0 0
        %955 = vmatpush1.bf16.xpose.msra.mxu0 0
        %956 = vmatprep.subr.bf16.mxu0 0
        %957 = vmatpush1.bf16.xpose.msra.mxu0 0
        %958 = vmatprep.subr.bf16.mxu0 0
        %959 = vmatpush1.bf16.xpose.msra.mxu0 0
        %960 = vmatprep.subr.bf16.mxu0 0
        %961 = vmatpush1.bf16.xpose.msra.mxu0 0
        %962 = vmatprep.subr.bf16.mxu0 0
        %963 = vmatpush1.bf16.xpose.msra.mxu0 0
        %964 = vmatprep.subr.bf16.mxu0 0
        %965 = vmatpush1.bf16.xpose.msra.mxu0 0
        %966 = vmatprep.subr.bf16.mxu0 0
        %967 = vmatpush1.bf16.xpose.msra.mxu0 0
        %968 = vmatprep.subr.bf16.mxu0 0
        %969 = vmatpush1.bf16.xpose.msra.mxu0 0
        %970 = vmatprep.subr.bf16.mxu0 0
        %971 = vmatpush1.bf16.xpose.msra.mxu0 0
        %972 = vmatprep.subr.bf16.mxu0 0
        %973 = vmatpush1.bf16.xpose.msra.mxu0 0
        %974 = vmatprep.subr.bf16.mxu0 0
        %975 = vmatpush1.bf16.xpose.msra.mxu0 0
        %976 = vmatprep.subr.bf16.mxu0 0
        %977 = vmatpush1.bf16.xpose.msra.mxu0 0
        %978 = vmatprep.subr.bf16.mxu0 0
        %979 = vmatpush1.bf16.xpose.msra.mxu0 0
        %980 = vmatprep.subr.bf16.mxu0 0
        %981 = vmatpush1.bf16.xpose.msra.mxu0 0
        %982 = vmatprep.subr.bf16.mxu0 0
        %983 = vmatpush1.bf16.xpose.msra.mxu0 0
        %984 = vmatprep.mubr.bf16.mxu0 0
        %985 = vmatmul.mubr.bf16.gmra.mrb[0].mxu0 %v947
        %v986 = vpop.f32.mrb[0].mxu0
        %v987 = vadd.f32 0.0, %v986
        %v988 = vpop.f32.mrb[0].mxu0
        %v989 = vpop.f32.mrb[0].mxu0
        %v990 = vpop.f32.mrb[0].mxu0
        %991 = vdwg.mxu0
        %v992 = vsel %vm721, %v987, -inf
        %993 = vmax.xlane.f32.xlu0 %v992
        %v994 = vpop.xlane.xlu0 %993
        %v995 = vsub.f32 %v987, %v994
        %v996 = vmul.f32 %v995, 1.442695
        %v997 = vpow.pop %v996
        %v998 = vsel %vm721, %v997, 0.0
        %999 = vadd.xlane.f32.xlu0 %v998
        %v1000 = vpop.xlane.xlu0 %999
        %v1001 = vrcp.pop %v1000
        %v1002 = vpack.c.bf16 %v997, %v997
        %1003 = vrot.lane.b32.xlu0 %v720, 112
        %v1004 = vpop.permute.xlu0 %1003
        %v1006 = vsel %vm721, %v1002, 0
        %v1009 = vsel %vm782, %v1004, 0
        %1011 = vmatprep.subr.bf16.mxu0 0
        %1012 = vmatpush1.bf16.msra.mxu0 %v1009
        %1013 = vmatprep.subr.bf16.mxu0 0
        %1014 = vmatpush1.bf16.msra.mxu0 0
        %1015 = vmatprep.subr.bf16.mxu0 0
        %1016 = vmatpush1.bf16.msra.mxu0 0
        %1017 = vmatprep.subr.bf16.mxu0 0
        %1018 = vmatpush1.bf16.msra.mxu0 0
        %1019 = vmatprep.subr.bf16.mxu0 0
        %1020 = vmatpush1.bf16.msra.mxu0 0
        %1021 = vmatprep.subr.bf16.mxu0 0
        %1022 = vmatpush1.bf16.msra.mxu0 0
        %1023 = vmatprep.subr.bf16.mxu0 0
        %1024 = vmatpush1.bf16.msra.mxu0 0
        %1025 = vmatprep.subr.bf16.mxu0 0
        %1026 = vmatpush1.bf16.msra.mxu0 0
        %1027 = vmatprep.subr.bf16.mxu0 0
        %1028 = vmatpush1.bf16.msra.mxu0 0
        %1029 = vmatprep.subr.bf16.mxu0 0
        %1030 = vmatpush1.bf16.msra.mxu0 0
        %1031 = vmatprep.subr.bf16.mxu0 0
        %1032 = vmatpush1.bf16.msra.mxu0 0
        %1033 = vmatprep.subr.bf16.mxu0 0
        %1034 = vmatpush1.bf16.msra.mxu0 0
        %1035 = vmatprep.subr.bf16.mxu0 0
        %1036 = vmatpush1.bf16.msra.mxu0 0
        %1037 = vmatprep.subr.bf16.mxu0 0
        %1038 = vmatpush1.bf16.msra.mxu0 0
        %1039 = vmatprep.subr.bf16.mxu0 0
        %1040 = vmatpush1.bf16.msra.mxu0 0
        %1041 = vmatprep.subr.bf16.mxu0 0
        %1042 = vmatpush1.bf16.msra.mxu0 0
        %1043 = vmatprep.mubr.bf16.mxu0 0
        %1044 = vmatmul.mubr.bf16.gmra.mrb[0].mxu0 %v1006
        %v1045 = vpop.f32.mrb[0].mxu0
        %v1046 = vadd.f32 0.0, %v1045
        %v1047 = vpop.f32.mrb[0].mxu0
        %v1048 = vpop.f32.mrb[0].mxu0
        %v1049 = vpop.f32.mrb[0].mxu0
        %1050 = vdwg.mxu0
        %v1051 = vmul.f32 %v1046, %v1001
        %v1052 = vpack.c.bf16 %v1051, %v1051
        %1053 = vrot.lane.b32.xlu0 %v718, 104
        %v1054 = vpop.permute.xlu0 %1053
        %1055 = vrot.lane.b32.xlu0 %v719, 104
        %v1056 = vpop.permute.xlu0 %1055
        %v1058 = vsel %vm721, %v1054, 0
        %v1061 = vsel %vm721, %v1056, 0
        %1063 = vmatprep.subr.bf16.mxu0 0
        %1064 = vmatpush1.bf16.xpose.msra.mxu0 %v1061
        %1065 = vmatprep.subr.bf16.mxu0 0
        %1066 = vmatpush1.bf16.xpose.msra.mxu0 0
        %1067 = vmatprep.subr.bf16.mxu0 0
        %1068 = vmatpush1.bf16.xpose.msra.mxu0 0
        %1069 = vmatprep.subr.bf16.mxu0 0
        %1070 = vmatpush1.bf16.xpose.msra.mxu0 0
        %1071 = vmatprep.subr.bf16.mxu0 0
        %1072 = vmatpush1.bf16.xpose.msra.mxu0 0
        %1073 = vmatprep.subr.bf16.mxu0 0
        %1074 = vmatpush1.bf16.xpose.msra.mxu0 0
        %1075 = vmatprep.subr.bf16.mxu0 0
        %1076 = vmatpush1.bf16.xpose.msra.mxu0 0
        %1077 = vmatprep.subr.bf16.mxu0 0
        %1078 = vmatpush1.bf16.xpose.msra.mxu0 0
        %1079 = vmatprep.subr.bf16.mxu0 0
        %1080 = vmatpush1.bf16.xpose.msra.mxu0 0
        %1081 = vmatprep.subr.bf16.mxu0 0
        %1082 = vmatpush1.bf16.xpose.msra.mxu0 0
        %1083 = vmatprep.subr.bf16.mxu0 0
        %1084 = vmatpush1.bf16.xpose.msra.mxu0 0
        %1085 = vmatprep.subr.bf16.mxu0 0
        %1086 = vmatpush1.bf16.xpose.msra.mxu0 0
        %1087 = vmatprep.subr.bf16.mxu0 0
        %1088 = vmatpush1.bf16.xpose.msra.mxu0 0
        %1089 = vmatprep.subr.bf16.mxu0 0
        %1090 = vmatpush1.bf16.xpose.msra.mxu0 0
        %1091 = vmatprep.subr.bf16.mxu0 0
        %1092 = vmatpush1.bf16.xpose.msra.mxu0 0
        %1093 = vmatprep.subr.bf16.mxu0 0
        %1094 = vmatpush1.bf16.xpose.msra.mxu0 0
        %1095 = vmatprep.mubr.bf16.mxu0 0
        %1096 = vmatmul.mubr.bf16.gmra.mrb[0].mxu0 %v1058
        %v1097 = vpop.f32.mrb[0].mxu0
        %v1098 = vadd.f32 0.0, %v1097
        %v1099 = vpop.f32.mrb[0].mxu0
        %v1100 = vpop.f32.mrb[0].mxu0
        %v1101 = vpop.f32.mrb[0].mxu0
        %1102 = vdwg.mxu0
        %v1103 = vsel %vm721, %v1098, -inf
        %1104 = vmax.xlane.f32.xlu0 %v1103
        %v1105 = vpop.xlane.xlu0 %1104
        %v1106 = vsub.f32 %v1098, %v1105
        %v1107 = vmul.f32 %v1106, 1.442695
        %v1108 = vpow.pop %v1107
        %v1109 = vsel %vm721, %v1108, 0.0
        %1110 = vadd.xlane.f32.xlu0 %v1109
        %v1111 = vpop.xlane.xlu0 %1110
        %v1112 = vrcp.pop %v1111
        %v1113 = vpack.c.bf16 %v1108, %v1108
        %1114 = vrot.lane.b32.xlu0 %v720, 104
        %v1115 = vpop.permute.xlu0 %1114
        %v1117 = vsel %vm721, %v1113, 0
        %v1120 = vsel %vm782, %v1115, 0
        %1122 = vmatprep.subr.bf16.mxu0 0
        %1123 = vmatpush1.bf16.msra.mxu0 %v1120
        %1124 = vmatprep.subr.bf16.mxu0 0
        %1125 = vmatpush1.bf16.msra.mxu0 0
        %1126 = vmatprep.subr.bf16.mxu0 0
        %1127 = vmatpush1.bf16.msra.mxu0 0
        %1128 = vmatprep.subr.bf16.mxu0 0
        %1129 = vmatpush1.bf16.msra.mxu0 0
        %1130 = vmatprep.subr.bf16.mxu0 0
        %1131 = vmatpush1.bf16.msra.mxu0 0
        %1132 = vmatprep.subr.bf16.mxu0 0
        %1133 = vmatpush1.bf16.msra.mxu0 0
        %1134 = vmatprep.subr.bf16.mxu0 0
        %1135 = vmatpush1.bf16.msra.mxu0 0
        %1136 = vmatprep.subr.bf16.mxu0 0
        %1137 = vmatpush1.bf16.msra.mxu0 0
        %1138 = vmatprep.subr.bf16.mxu0 0
        %1139 = vmatpush1.bf16.msra.mxu0 0
        %1140 = vmatprep.subr.bf16.mxu0 0
        %1141 = vmatpush1.bf16.msra.mxu0 0
        %1142 = vmatprep.subr.bf16.mxu0 0
        %1143 = vmatpush1.bf16.msra.mxu0 0
        %1144 = vmatprep.subr.bf16.mxu0 0
        %1145 = vmatpush1.bf16.msra.mxu0 0
        %1146 = vmatprep.subr.bf16.mxu0 0
        %1147 = vmatpush1.bf16.msra.mxu0 0
        %1148 = vmatprep.subr.bf16.mxu0 0
        %1149 = vmatpush1.bf16.msra.mxu0 0
        %1150 = vmatprep.subr.bf16.mxu0 0
        %1151 = vmatpush1.bf16.msra.mxu0 0
        %1152 = vmatprep.subr.bf16.mxu0 0
        %1153 = vmatpush1.bf16.msra.mxu0 0
        %1154 = vmatprep.mubr.bf16.mxu0 0
        %1155 = vmatmul.mubr.bf16.gmra.mrb[0].mxu0 %v1117
        %v1156 = vpop.f32.mrb[0].mxu0
        %v1157 = vadd.f32 0.0, %v1156
        %v1158 = vpop.f32.mrb[0].mxu0
        %v1159 = vpop.f32.mrb[0].mxu0
        %v1160 = vpop.f32.mrb[0].mxu0
        %1161 = vdwg.mxu0
        %v1162 = vmul.f32 %v1157, %v1112
        %v1163 = vpack.c.bf16 %v1162, %v1162
        %1165 = vrot.lane.b32.xlu0 %v941, 8
        %v1166 = vpop.permute.xlu0 %1165
        %1168 = vrot.lane.b32.xlu0 %v1052, 16
        %v1169 = vpop.permute.xlu0 %1168
        %1171 = vrot.lane.b32.xlu0 %v1163, 24
        %v1172 = vpop.permute.xlu0 %1171
        %v1175 = vsel %vm721, %v827, %v1166
        %vm1176 = vcmask 130048
        %v1178 = vsel %vm1176, %v1175, %v1169
        %vm1179 = vcmask 195584
        %v1181 = vsel %vm1179, %v1178, %v1172
        %v1182 = vld [vmem:[%s9] sm:$0xf]
        %v1183 = vld [vmem:[%s9 + $0x4] sm:$0xf]
        %v1184 = vld [vmem:[%s9 + $0x8] sm:$0xf]
        %v1185 = vld [vmem:[%s9 + $0xc] sm:$0xf]
        %v1186 = vld [vmem:[%s10] sm:$0x1]
        %v1188 = vlaneseq
        %v1189 = vshrl.u32 %v1188, 7
        %v1190 = vsub.s32 0, %v1189
        %v1191 = vrot.slane %v1186, %v1190
        %v1197 = vunpack.c.l.b16 %v1182
        %v1198 = vunpack.c.l.b16 %v1183
        %v1199 = vunpack.c.l.b16 %v1184
        %v1200 = vunpack.c.l.b16 %v1185
        %v1201 = vpack.c.b16 %v1198, %v1197
        %v1202 = vpack.c.b16 %v1200, %v1199
        %v1205 = vsel %vm542, %v1181, 0
        %1207 = vmatprep.subr.bf16.mxu0 0
        %1208 = vmatpush1.bf16.msra.mxu0 %v1201
        %1209 = vmatprep.subr.bf16.mxu0 0
        %1210 = vmatpush1.bf16.msra.mxu0 %v1202
        %1211 = vmatprep.subr.bf16.mxu0 0
        %1212 = vmatpush1.bf16.msra.mxu0 0
        %1213 = vmatprep.subr.bf16.mxu0 0
        %1214 = vmatpush1.bf16.msra.mxu0 0
        %1215 = vmatprep.subr.bf16.mxu0 0
        %1216 = vmatpush1.bf16.msra.mxu0 0
        %1217 = vmatprep.subr.bf16.mxu0 0
        %1218 = vmatpush1.bf16.msra.mxu0 0
        %1219 = vmatprep.subr.bf16.mxu0 0
        %1220 = vmatpush1.bf16.msra.mxu0 0
        %1221 = vmatprep.subr.bf16.mxu0 0
        %1222 = vmatpush1.bf16.msra.mxu0 0
        %1223 = vmatprep.subr.bf16.mxu0 0
        %1224 = vmatpush1.bf16.msra.mxu0 0
        %1225 = vmatprep.subr.bf16.mxu0 0
        %1226 = vmatpush1.bf16.msra.mxu0 0
        %1227 = vmatprep.subr.bf16.mxu0 0
        %1228 = vmatpush1.bf16.msra.mxu0 0
        %1229 = vmatprep.subr.bf16.mxu0 0
        %1230 = vmatpush1.bf16.msra.mxu0 0
        %1231 = vmatprep.subr.bf16.mxu0 0
        %1232 = vmatpush1.bf16.msra.mxu0 0
        %1233 = vmatprep.subr.bf16.mxu0 0
        %1234 = vmatpush1.bf16.msra.mxu0 0
        %1235 = vmatprep.subr.bf16.mxu0 0
        %1236 = vmatpush1.bf16.msra.mxu0 0
        %1237 = vmatprep.subr.bf16.mxu0 0
        %1238 = vmatpush1.bf16.msra.mxu0 0
        %1239 = vmatprep.mubr.bf16.mxu0 0
        %1240 = vmatmul.mubr.bf16.gmra.mrb[0].mxu0 %v1205
        %v1241 = vpop.f32.mrb[0].mxu0
        %v1242 = vadd.f32 %v1191, %v1241
        %v1243 = vpop.f32.mrb[0].mxu0
        %v1244 = vpop.f32.mrb[0].mxu0
        %v1245 = vpop.f32.mrb[0].mxu0
        %1246 = vdwg.mxu0
        %1247 = vst.msk [vmem:[%s514] sm:$0xff] %vm542, %v1242
        %s1248 = sand.u32 %s287, 1
        %s1249 = scalar_lea.sflag [#allocation4], %s1248
        %s1250 = sand.u32 %s287, 1
        %s1251 = smul.addr %s1250, 8
        %s1252 = scalar_lea.vmem [#allocation13], %s1251
        // Predicated region
        $region89: #{tpu_custom_call.1} parent=63 // pred_check
          %p1253 = pneg %p297
        $region90: #{tpu_custom_call.1} parent=63 // pred_check_branch
          %1255 = sbr.rel (%p1253) target = $region92
        $region91: #{tpu_custom_call.1} parent=63 // pred_region
          %s1257 = ssub.s32 128, 128
          %1258 = vsyncadd %s1249, %s1257
          %s1259 = smul.addr %s33, 128
          %s1260 = scalar_lea.hbm %s11, %s1259
          %s1262 = sshll.u32 %s1252, 4
          %s1263 = int_to_ptr.vmem [resolvable:$true] %s1262
          %1265 = dma.vmem_to_hbm [thread:$0]  %s1263, 128, %s1260, %s1249
        $region92: #{tpu_custom_call.1} parent=63 // pred_fallthru
          _
      $region64: #{tpu_custom_call.1} parent=5 // pred_fallthru
        _
      %p1266 = scmp.le.s32.totalorder 2, %s28
      // Predicated region
      $region93: #{tpu_custom_call.1} parent=5 // pred_check
        %p1267 = pneg %p1266
      $region94: #{tpu_custom_call.1} parent=5 // pred_check_branch
        %1269 = sbr.rel (%p1267) target = $region96
      $region95: #{tpu_custom_call.1} parent=5 // pred_region
        %s1270 = ssub.s32 %s28, 2
        // Predicated region
        $region97: #{tpu_custom_call.1} parent=95 // pred_check
          %p1271 = pneg %p303
        $region98: #{tpu_custom_call.1} parent=95 // pred_check_branch
          %1273 = sbr.rel (%p1271) target = $region100
        $region99: #{tpu_custom_call.1} parent=95 // pred_region
          %s1274 = sand.u32 %s288, 1
          %s1275 = scalar_lea.sflag [#allocation4], %s1274
          %s1276 = sand.u32 %s288, 1
          %s1277 = smul.addr %s1276, 8
          %s1278 = scalar_lea.vmem [#allocation13], %s1277
          %1279 = dma.done %s1275, 128
        $region100: #{tpu_custom_call.1} parent=95 // pred_fallthru
          _
      $region96: #{tpu_custom_call.1} parent=5 // pred_fallthru
        _
    $region6: #{tpu_custom_call.1} parent=1 // loop_footer
      %s32 = sadd.s32 1, %s28
    $region7: #{tpu_custom_call.1} parent=1 // loop_footer_branch
      %27 = sbr.rel target = $region3
    $region8: #{tpu_custom_call.1} parent=1 // loop_exit
      _
    %1280 = vsyncpa [#allocation3], 1
    %s1281 = scalar_lea.sflag [#allocation3], 1
    %1282 = vsyncpa %s1281, 1
    %1283 = vsyncpa [#allocation6], 1
    %s1284 = scalar_lea.sflag [#allocation6], 1
    %1285 = vsyncpa %s1284, 1
    %1286 = vsyncpa [#allocation9], 1
    %1287 = vsyncpa [#allocation12], 1
    %1288 = vsyncpa [#allocation4], 1
    %s1289 = scalar_lea.sflag [#allocation4], 1
    %1290 = vsyncpa %s1289, 1

</llo_original>
